<compile_context>
chip_gen: v7x
topology: tpu7x:2x2x1
jax: 0.10.0
libtpu: 0.0.40
codegen_flags: <defaults>
</compile_context>

<pallas_src>
import math
from functools import partial

import jax
import jax.numpy as jnp
from jax import lax
from jax.experimental import pallas as pl
from jax.experimental.pallas import tpu as pltpu

_LN_EPS = 1e-5  # torch.nn.LayerNorm default


def _round_up(x, m):
    return (x + m - 1) // m * m


def _gelu_exact(x):
    # F.gelu default (erf-based).  NOTE: tanh-approx gelu would offload to the
    # EUP slot, but we keep exact erf for parity with torch.
    return 0.5 * x * (1.0 + lax.erf(x * (1.0 / math.sqrt(2.0))))


# ---------------------------------------------------------------------------
# Kernel 1: multi-head cross-attention + residual + LayerNorm1 (per batch)
# ---------------------------------------------------------------------------
def _mha_ln1_kernel(x_ref, e_ref, wq_ref, bq_ref, wk_ref, bk_ref,
                    wv_ref, bv_ref, wo_ref, bo_ref, g_ref, b_ref, o_ref,
                    *, num_heads, head_dim, eps):
    x = x_ref[0]            # (L, E)
    enc = e_ref[0]          # (S, E)

    # Projections: operands in native dtype, f32 accumulation on the MXU.
    q = jnp.dot(x, wq_ref[...], preferred_element_type=jnp.float32) + bq_ref[...]
    k = jnp.dot(enc, wk_ref[...], preferred_element_type=jnp.float32) + bk_ref[...]
    v = jnp.dot(enc, wv_ref[...], preferred_element_type=jnp.float32) + bv_ref[...]

    wo = wo_ref[...]
    scale = 1.0 / math.sqrt(head_dim)

    # Per-head attention; each head's output is folded directly into the
    # output projection (avoids a lane-sized concat and keeps everything in
    # f32 vregs until the final residual add).
    attn = bo_ref[...].astype(jnp.float32)                       # (1, E)
    for h in range(num_heads):
        sl = slice(h * head_dim, (h + 1) * head_dim)
        qh, kh, vh = q[:, sl], k[:, sl], v[:, sl]
        s = jnp.einsum('ld,sd->ls', qh, kh,
                       preferred_element_type=jnp.float32) * scale
        s = s - jnp.max(s, axis=-1, keepdims=True)
        p = jnp.exp(s)
        p = p / jnp.sum(p, axis=-1, keepdims=True)
        ah = jnp.dot(p, vh, preferred_element_type=jnp.float32)          # (L, hd)
        attn = attn + jnp.dot(ah, wo[sl, :],
                              preferred_element_type=jnp.float32)        # (L, E)

    # Residual + LayerNorm1.
    z = x.astype(jnp.float32) + attn
    mean = jnp.mean(z, axis=-1, keepdims=True)
    c = z - mean
    var = jnp.mean(c * c, axis=-1, keepdims=True)
    y = c * lax.rsqrt(var + eps) * g_ref[...] + b_ref[...]
    o_ref[0] = y.astype(o_ref.dtype)


def mha_ln1(x_ble, enc_bse, wq, bq, wk, bk, wv, bv, wo, bo, g1, beta1,
            *, num_heads, eps=_LN_EPS):
    B, L, E = x_ble.shape
    S = enc_bse.shape[1]
    assert E % num_heads == 0
    hd = E // num_heads

    two_d = lambda a: a.reshape(1, -1)
    full = lambda shape: pl.BlockSpec(shape, lambda b: (0, 0))
    kern = partial(_mha_ln1_kernel, num_heads=num_heads, head_dim=hd, eps=eps)

    itemsize = jnp.dtype(x_ble.dtype).itemsize
    flops = int(2 * B * E * E * (2 * L + 2 * S) + 4 * B * num_heads * L * S * hd)
    bytes_acc = int(itemsize * (x_ble.size + enc_bse.size + 4 * E * E + 6 * E
                                + B * L * E))
    # Rough VMEM budget: double-buffered per-batch activations + resident
    # weights + f32 intermediates + slack.
    need = (2 * itemsize * (2 * L * E + S * E)            # x / out / enc tiles
            + 2 * itemsize * (4 * E * E + 6 * E)          # weights / biases / LN
            + 4 * (3 * max(L, S) * E + 2 * L * S)         # f32 q/k/v, scores, probs
            + (1 << 22))                                  # slack
    vmem_limit = int(min(64 * 1024 * 1024, max(16 * 1024 * 1024, need)))

    return pl.pallas_call(
        kern,
        out_shape=jax.ShapeDtypeStruct((B, L, E), x_ble.dtype),
        grid_spec=pltpu.PrefetchScalarGridSpec(
            num_scalar_prefetch=0,
            grid=(B,),
            in_specs=[
                pl.BlockSpec((1, L, E), lambda b: (b, 0, 0)),   # x   (one batch)
                pl.BlockSpec((1, S, E), lambda b: (b, 0, 0)),   # enc_p
                full((E, E)), full((1, E)),                     # Wq, bq
                full((E, E)), full((1, E)),                     # Wk, bk
                full((E, E)), full((1, E)),                     # Wv, bv
                full((E, E)), full((1, E)),                     # Wo, bo
                full((1, E)), full((1, E)),                     # LN1 gamma, beta
            ],
            out_specs=pl.BlockSpec((1, L, E), lambda b: (b, 0, 0)),
        ),
        compiler_params=pltpu.CompilerParams(
            dimension_semantics=("parallel",),
            vmem_limit_bytes=vmem_limit),
        cost_estimate=pl.CostEstimate(
            flops=flops, transcendentals=int(B * num_heads * L * S),
            bytes_accessed=bytes_acc),
    )(x_ble, enc_bse, wq, two_d(bq), wk, two_d(bk), wv, two_d(bv),
      wo, two_d(bo), two_d(g1), two_d(beta1))


# ---------------------------------------------------------------------------
# Kernel 2: FeedForward + residual + LayerNorm2 over flattened rows
# ---------------------------------------------------------------------------
def _ffn_ln2_kernel(x_ref, w1_ref, b1_ref, w2_ref, b2_ref, g_ref, b_ref,
                    o_ref, acc_ref, *, e_true, eps):
    hi = pl.program_id(1)

    @pl.when(hi == 0)
    def _():
        acc_ref[...] = jnp.zeros_like(acc_ref)

    x = x_ref[...]                                               # (tm, Ep)
    h = jnp.dot(x, w1_ref[...], preferred_element_type=jnp.float32)
    h = _gelu_exact(h + b1_ref[...].astype(jnp.float32))
    acc_ref[...] += jnp.dot(h.astype(w2_ref.dtype), w2_ref[...],
                            preferred_element_type=jnp.float32)

    @pl.when(hi == pl.num_programs(1) - 1)
    def _():
        y = acc_ref[...] + b2_ref[...].astype(jnp.float32)
        z = x.astype(jnp.float32) + y                            # residual
        # LayerNorm2 over the true E lanes only (lanes >= e_true are padding).
        lane = lax.broadcasted_iota(jnp.int32, z.shape, 1)
        mask = lane < e_true
        zm = jnp.where(mask, z, 0.0)
        mean = jnp.sum(zm, axis=-1, keepdims=True) * (1.0 / e_true)
        c = jnp.where(mask, z - mean, 0.0)
        var = jnp.sum(c * c, axis=-1, keepdims=True) * (1.0 / e_true)
        out = c * lax.rsqrt(var + eps) * g_ref[...] + b_ref[...]
        o_ref[...] = out.astype(o_ref.dtype)


def ffn_ln2(x, w1, b1, w2, b2, g2, beta2, *, tm=256, eps=_LN_EPS):
    R, E = x.shape
    H = w1.shape[1]
    assert w1.shape == (E, H) and w2.shape == (H, E)

    # Lane-dense output: pad E up to a multiple of 128.
    Ep = _round_up(E, 128)
    # Row tile: as large as the problem allows (fills the MXU LHS, amortizes
    # per-grid-step overhead), multiple of 8 sublanes.
    tm = min(tm, _round_up(R, 8))
    Rp = _round_up(R, tm)
    # Hidden (reduction) tile: stream W1/W2 chunks so large hidden dims never
    # need to be fully VMEM-resident.
    if H % 128 == 0 and H > 512:
        th = 512 if H % 512 == 0 else 128
    else:
        th = H
    n_h = H // th

    # Zero-pad activations / weights / LN params to the padded lane width.
    xp = jnp.pad(x, ((0, Rp - R), (0, Ep - E))) if (Rp, Ep) != (R, E) else x
    w1p = jnp.pad(w1, ((0, Ep - E), (0, 0))) if Ep != E else w1
    w2p = jnp.pad(w2, ((0, 0), (0, Ep - E))) if Ep != E else w2
    pad1 = lambda a: (jnp.pad(a, (0, Ep - E)) if Ep != E else a).reshape(1, Ep)
    b1p = b1.reshape(1, H)
    b2p, g2p, beta2p = pad1(b2), pad1(g2), pad1(beta2)

    kern = partial(_ffn_ln2_kernel, e_true=E, eps=eps)

    itemsize = jnp.dtype(x.dtype).itemsize
    # Rough VMEM budget: double-buffered weight/activation tiles + accumulator
    # + gelu intermediate + slack.
    need = (2 * (Ep * th + th * Ep) * itemsize      # w1/w2 tiles (double-buffered)
            + 4 * tm * Ep * itemsize                # x / out tiles
            + tm * Ep * 4 + 2 * tm * th * 4         # accumulator + intermediate
            + (1 << 22))                            # slack
    vmem_limit = int(min(64 * 1024 * 1024, max(8 * 1024 * 1024, need)))

    out = pl.pallas_call(
        kern,
        out_shape=jax.ShapeDtypeStruct((Rp, Ep), x.dtype),
        grid_spec=pltpu.PrefetchScalarGridSpec(
            num_scalar_prefetch=0,
            grid=(Rp // tm, n_h),
            in_specs=[
                pl.BlockSpec((tm, Ep), lambda i, h: (i, 0)),   # x rows
                pl.BlockSpec((Ep, th), lambda i, h: (0, h)),   # W1 column tile
                pl.BlockSpec((1, th),  lambda i, h: (0, h)),   # b1 tile
                pl.BlockSpec((th, Ep), lambda i, h: (h, 0)),   # W2 row tile
                pl.BlockSpec((1, Ep),  lambda i, h: (0, 0)),   # b2
                pl.BlockSpec((1, Ep),  lambda i, h: (0, 0)),   # LN2 gamma
                pl.BlockSpec((1, Ep),  lambda i, h: (0, 0)),   # LN2 beta
            ],
            out_specs=pl.BlockSpec((tm, Ep), lambda i, h: (i, 0)),
            scratch_shapes=[pltpu.VMEM((tm, Ep), jnp.float32)],
        ),
        compiler_params=pltpu.CompilerParams(
            dimension_semantics=("parallel", "arbitrary"),
            vmem_limit_bytes=vmem_limit),
        cost_estimate=pl.CostEstimate(
            flops=int(4 * Rp * Ep * H),
            transcendentals=int(Rp * H),
            bytes_accessed=int((xp.size + w1p.size + w2p.size + Rp * Ep) * itemsize)),
    )(xp, w1p, b1p, w2p, b2p, g2p, beta2p)
    return out[:R, :E]


# ---------------------------------------------------------------------------
# Full TransformerBlock forward
# ---------------------------------------------------------------------------
def transformer_block(x_lbe, enc_sbe, p, *, num_heads):
    """x: (L, B, E), enc_p: (S, B, E) — same layout as torch nn.MultiheadAttention."""
    L, B, E = x_lbe.shape
    # Batch-major layout gives contiguous per-batch blocks for the attention
    # kernel and a contiguous (B*L, E) flatten for the FFN kernel.
    x_ble = jnp.transpose(x_lbe, (1, 0, 2))
    enc_bse = jnp.transpose(enc_sbe, (1, 0, 2))

    x1 = mha_ln1(x_ble, enc_bse,
                 p['wq'], p['bq'], p['wk'], p['bk'], p['wv'], p['bv'],
                 p['wo'], p['bo'], p['ln1_g'], p['ln1_b'],
                 num_heads=num_heads)

    y = ffn_ln2(x1.reshape(B * L, E),
                p['w1'], p['b1'], p['w2'], p['b2'], p['ln2_g'], p['ln2_b'])
    return jnp.transpose(y.reshape(B, L, E), (1, 0, 2))


# Pure-JAX reference (mirrors torch semantics) for the correctness check.
def transformer_block_ref(x_lbe, enc_sbe, p, *, num_heads):
    x = jnp.transpose(x_lbe, (1, 0, 2)).astype(jnp.float32)
    e = jnp.transpose(enc_sbe, (1, 0, 2)).astype(jnp.float32)
    B, L, E = x.shape
    S = e.shape[1]
    hd = E // num_heads

    def split_heads(t):
        return t.reshape(B, t.shape[1], num_heads, hd).transpose(0, 2, 1, 3)

    q = split_heads(x @ p['wq'] + p['bq'])
    k = split_heads(e @ p['wk'] + p['bk'])
    v = split_heads(e @ p['wv'] + p['bv'])
    s = jnp.einsum('bhld,bhsd->bhls', q, k) / math.sqrt(hd)
    a = jnp.einsum('bhls,bhsd->bhld', jax.nn.softmax(s, axis=-1), v)
    a = a.transpose(0, 2, 1, 3).reshape(B, L, E)
    attn = a @ p['wo'] + p['bo']

    def ln(t, g, b):
        m = jnp.mean(t, -1, keepdims=True)
        var = jnp.mean((t - m) ** 2, -1, keepdims=True)
        return (t - m) * lax.rsqrt(var + _LN_EPS) * g + b

    x1 = ln(x + attn, p['ln1_g'], p['ln1_b'])
    h = jax.nn.gelu(x1 @ p['w1'] + p['b1'], approximate=False)
    x2 = ln(x1 + (h @ p['w2'] + p['b2']), p['ln2_g'], p['ln2_b'])
    return jnp.transpose(x2, (1, 0, 2))


if __name__ == "__main__":
    L, S, B = 8, 16, 2          # target seq, encoder seq, batch
    E, NH, HID = 32, 4, 64      # embed_dim, num_heads, hidden_dim

    key = jax.random.PRNGKey(0)
    ks = jax.random.split(key, 14)

    x = jax.random.normal(ks[0], (L, B, E), dtype=jnp.float32)
    enc_p = jax.random.normal(ks[1], (S, B, E), dtype=jnp.float32)

    def lin(kw, kb, fan_in, fan_out):
        lim = 1.0 / math.sqrt(fan_in)
        w = jax.random.uniform(kw, (fan_in, fan_out), jnp.float32, -lim, lim)
        b = jax.random.uniform(kb, (fan_out,), jnp.float32, -lim, lim)
        return w, b

    wq, bq = lin(ks[2], ks[3], E, E)
    wk, bk = lin(ks[4], ks[5], E, E)
    wv, bv = lin(ks[6], ks[7], E, E)
    wo, bo = lin(ks[8], ks[9], E, E)
    w1, b1 = lin(ks[10], ks[11], E, HID)
    w2, b2 = lin(ks[12], ks[13], HID, E)

    params = dict(
        wq=wq, bq=bq, wk=wk, bk=bk, wv=wv, bv=bv, wo=wo, bo=bo,
        ln1_g=jnp.ones((E,), jnp.float32), ln1_b=jnp.zeros((E,), jnp.float32),
        w1=w1, b1=b1, w2=w2, b2=b2,
        ln2_g=jnp.ones((E,), jnp.float32), ln2_b=jnp.zeros((E,), jnp.float32))

    out = transformer_block(x, enc_p, params, num_heads=NH)
    out = jax.block_until_ready(out)

    ref = transformer_block_ref(x, enc_p, params, num_heads=NH)
    assert out.shape == (L, B, E)
    max_err = float(jnp.max(jnp.abs(out - ref)))
    assert jnp.allclose(out, ref, atol=1e-4, rtol=1e-4), f"mismatch, max err {max_err}"

    print("KERNEL_OK")
</pallas_src>

<mosaic_0001>
module attributes {stable_mosaic.version = 11 : i64} {
  func.func @_mha_ln1_kernel(%arg0: i32, %arg1: memref<1x8x32xf32, #tpu.memory_space<vmem>>, %arg2: memref<1x16x32xf32, #tpu.memory_space<vmem>>, %arg3: memref<32x32xf32, #tpu.memory_space<vmem>>, %arg4: memref<1x32xf32, #tpu.memory_space<vmem>>, %arg5: memref<32x32xf32, #tpu.memory_space<vmem>>, %arg6: memref<1x32xf32, #tpu.memory_space<vmem>>, %arg7: memref<32x32xf32, #tpu.memory_space<vmem>>, %arg8: memref<1x32xf32, #tpu.memory_space<vmem>>, %arg9: memref<32x32xf32, #tpu.memory_space<vmem>>, %arg10: memref<1x32xf32, #tpu.memory_space<vmem>>, %arg11: memref<1x32xf32, #tpu.memory_space<vmem>>, %arg12: memref<1x32xf32, #tpu.memory_space<vmem>>, %arg13: memref<1x8x32xf32, #tpu.memory_space<vmem>>) attributes {dimension_semantics = [#tpu.dimension_semantics<parallel>], iteration_bounds = array<i64: 2>, scalar_prefetch = 0 : i64, scratch_operands = 0 : i64, tpu.core_type = #tpu.core_type<tc>, window_params = [{transform_indices = @transform_0, window_bounds = array<i64: 1, 8, 32>}, {transform_indices = @transform_1, window_bounds = array<i64: 1, 16, 32>}, {pipeline_mode = #tpu.pipeline_mode<synchronous>, transform_indices = @transform_2, window_bounds = array<i64: 32, 32>}, {pipeline_mode = #tpu.pipeline_mode<synchronous>, transform_indices = @transform_3, window_bounds = array<i64: 1, 32>}, {pipeline_mode = #tpu.pipeline_mode<synchronous>, transform_indices = @transform_4, window_bounds = array<i64: 32, 32>}, {pipeline_mode = #tpu.pipeline_mode<synchronous>, transform_indices = @transform_5, window_bounds = array<i64: 1, 32>}, {pipeline_mode = #tpu.pipeline_mode<synchronous>, transform_indices = @transform_6, window_bounds = array<i64: 32, 32>}, {pipeline_mode = #tpu.pipeline_mode<synchronous>, transform_indices = @transform_7, window_bounds = array<i64: 1, 32>}, {pipeline_mode = #tpu.pipeline_mode<synchronous>, transform_indices = @transform_8, window_bounds = array<i64: 32, 32>}, {pipeline_mode = #tpu.pipeline_mode<synchronous>, transform_indices = @transform_9, window_bounds = array<i64: 1, 32>}, {pipeline_mode = #tpu.pipeline_mode<synchronous>, transform_indices = @transform_10, window_bounds = array<i64: 1, 32>}, {pipeline_mode = #tpu.pipeline_mode<synchronous>, transform_indices = @transform_11, window_bounds = array<i64: 1, 32>}, {transform_indices = @transform_12, window_bounds = array<i64: 1, 8, 32>}]} {
    %c0 = arith.constant 0 : index
    %c0_0 = arith.constant 0 : index
    %c0_1 = arith.constant 0 : index
    %0 = vector.load %arg1[%c0, %c0_0, %c0_1] : memref<1x8x32xf32, #tpu.memory_space<vmem>>, vector<1x8x32xf32>
    %1 = vector.shape_cast %0 : vector<1x8x32xf32> to vector<8x32xf32>
    %c0_2 = arith.constant 0 : index
    %c0_3 = arith.constant 0 : index
    %c0_4 = arith.constant 0 : index
    %2 = vector.load %arg2[%c0_2, %c0_3, %c0_4] : memref<1x16x32xf32, #tpu.memory_space<vmem>>, vector<1x16x32xf32>
    %3 = vector.shape_cast %2 : vector<1x16x32xf32> to vector<16x32xf32>
    %c0_5 = arith.constant 0 : index
    %c0_6 = arith.constant 0 : index
    %4 = vector.load %arg3[%c0_5, %c0_6] : memref<32x32xf32, #tpu.memory_space<vmem>>, vector<32x32xf32>
    %cst = arith.constant dense<0.000000e+00> : vector<8x32xf32>
    %5 = tpu.matmul %1, %4, %cst {dimension_numbers = #tpu.dot_dimension_numbers<[1], [0], [0], [1], [0, 0, 1, 1], [], []>} : vector<8x32xf32>, vector<32x32xf32>, vector<8x32xf32> -> vector<8x32xf32>
    %c0_7 = arith.constant 0 : index
    %c0_8 = arith.constant 0 : index
    %6 = vector.load %arg4[%c0_7, %c0_8] : memref<1x32xf32, #tpu.memory_space<vmem>>, vector<1x32xf32>
    %7 = vector.broadcast %6 : vector<1x32xf32> to vector<8x32xf32>
    %8 = arith.addf %5, %7 : vector<8x32xf32>
    %c0_9 = arith.constant 0 : index
    %c0_10 = arith.constant 0 : index
    %9 = vector.load %arg5[%c0_9, %c0_10] : memref<32x32xf32, #tpu.memory_space<vmem>>, vector<32x32xf32>
    %cst_11 = arith.constant dense<0.000000e+00> : vector<16x32xf32>
    %10 = tpu.matmul %3, %9, %cst_11 {dimension_numbers = #tpu.dot_dimension_numbers<[1], [0], [0], [1], [0, 0, 1, 1], [], []>} : vector<16x32xf32>, vector<32x32xf32>, vector<16x32xf32> -> vector<16x32xf32>
    %c0_12 = arith.constant 0 : index
    %c0_13 = arith.constant 0 : index
    %11 = vector.load %arg6[%c0_12, %c0_13] : memref<1x32xf32, #tpu.memory_space<vmem>>, vector<1x32xf32>
    %12 = vector.broadcast %11 : vector<1x32xf32> to vector<16x32xf32>
    %13 = arith.addf %10, %12 : vector<16x32xf32>
    %c0_14 = arith.constant 0 : index
    %c0_15 = arith.constant 0 : index
    %14 = vector.load %arg7[%c0_14, %c0_15] : memref<32x32xf32, #tpu.memory_space<vmem>>, vector<32x32xf32>
    %cst_16 = arith.constant dense<0.000000e+00> : vector<16x32xf32>
    %15 = tpu.matmul %3, %14, %cst_16 {dimension_numbers = #tpu.dot_dimension_numbers<[1], [0], [0], [1], [0, 0, 1, 1], [], []>} : vector<16x32xf32>, vector<32x32xf32>, vector<16x32xf32> -> vector<16x32xf32>
    %c0_17 = arith.constant 0 : index
    %c0_18 = arith.constant 0 : index
    %16 = vector.load %arg8[%c0_17, %c0_18] : memref<1x32xf32, #tpu.memory_space<vmem>>, vector<1x32xf32>
    %17 = vector.broadcast %16 : vector<1x32xf32> to vector<16x32xf32>
    %18 = arith.addf %15, %17 : vector<16x32xf32>
    %c0_19 = arith.constant 0 : index
    %c0_20 = arith.constant 0 : index
    %19 = vector.load %arg9[%c0_19, %c0_20] : memref<32x32xf32, #tpu.memory_space<vmem>>, vector<32x32xf32>
    %c0_21 = arith.constant 0 : index
    %c0_22 = arith.constant 0 : index
    %20 = vector.load %arg10[%c0_21, %c0_22] : memref<1x32xf32, #tpu.memory_space<vmem>>, vector<1x32xf32>
    %21 = vector.extract_strided_slice %8 {offsets = [0, 0], sizes = [8, 8], strides = [1, 1]} : vector<8x32xf32> to vector<8x8xf32>
    %22 = vector.extract_strided_slice %13 {offsets = [0, 0], sizes = [16, 8], strides = [1, 1]} : vector<16x32xf32> to vector<16x8xf32>
    %23 = vector.extract_strided_slice %18 {offsets = [0, 0], sizes = [16, 8], strides = [1, 1]} : vector<16x32xf32> to vector<16x8xf32>
    "tpu.trace_start"() <{level = 10 : i32, message = "ld,sd->ls"}> : () -> ()
    %cst_23 = arith.constant dense<0.000000e+00> : vector<8x16xf32>
    %24 = tpu.matmul %21, %22, %cst_23 {dimension_numbers = #tpu.dot_dimension_numbers<[1], [1], [0], [0], [0, 0, 1, 0], [], []>} : vector<8x8xf32>, vector<16x8xf32>, vector<8x16xf32> -> vector<8x16xf32>
    "tpu.trace_stop"() : () -> ()
    %cst_24 = arith.constant 0.353553385 : f32
    %25 = vector.broadcast %cst_24 : f32 to vector<8x16xf32>
    %26 = arith.mulf %24, %25 : vector<8x16xf32>
    %cst_25 = arith.constant dense<0xFF800000> : vector<8xf32>
    %27 = vector.multi_reduction <maximumf>, %26, %cst_25 [1] : vector<8x16xf32> to vector<8xf32>
    %28 = vector.shape_cast %27 : vector<8xf32> to vector<8x1xf32>
    %29 = vector.broadcast %28 : vector<8x1xf32> to vector<8x16xf32>
    %30 = arith.subf %26, %29 : vector<8x16xf32>
    %31 = math.exp %30 : vector<8x16xf32>
    %cst_26 = arith.constant dense<0.000000e+00> : vector<8xf32>
    %32 = vector.multi_reduction <add>, %31, %cst_26 [1] : vector<8x16xf32> to vector<8xf32>
    %33 = vector.shape_cast %32 : vector<8xf32> to vector<8x1xf32>
    %34 = vector.broadcast %33 : vector<8x1xf32> to vector<8x16xf32>
    %35 = arith.divf %31, %34 : vector<8x16xf32>
    %cst_27 = arith.constant dense<0.000000e+00> : vector<8x8xf32>
    %36 = tpu.matmul %35, %23, %cst_27 {dimension_numbers = #tpu.dot_dimension_numbers<[1], [0], [0], [1], [0, 0, 1, 1], [], []>} : vector<8x16xf32>, vector<16x8xf32>, vector<8x8xf32> -> vector<8x8xf32>
    %37 = vector.extract_strided_slice %19 {offsets = [0, 0], sizes = [8, 32], strides = [1, 1]} : vector<32x32xf32> to vector<8x32xf32>
    %cst_28 = arith.constant dense<0.000000e+00> : vector<8x32xf32>
    %38 = tpu.matmul %36, %37, %cst_28 {dimension_numbers = #tpu.dot_dimension_numbers<[1], [0], [0], [1], [0, 0, 1, 1], [], []>} : vector<8x8xf32>, vector<8x32xf32>, vector<8x32xf32> -> vector<8x32xf32>
    %39 = vector.broadcast %20 : vector<1x32xf32> to vector<8x32xf32>
    %40 = arith.addf %39, %38 : vector<8x32xf32>
    %41 = vector.extract_strided_slice %8 {offsets = [0, 8], sizes = [8, 8], strides = [1, 1]} : vector<8x32xf32> to vector<8x8xf32>
    %42 = vector.extract_strided_slice %13 {offsets = [0, 8], sizes = [16, 8], strides = [1, 1]} : vector<16x32xf32> to vector<16x8xf32>
    %43 = vector.extract_strided_slice %18 {offsets = [0, 8], sizes = [16, 8], strides = [1, 1]} : vector<16x32xf32> to vector<16x8xf32>
    "tpu.trace_start"() <{level = 10 : i32, message = "ld,sd->ls"}> : () -> ()
    %cst_29 = arith.constant dense<0.000000e+00> : vector<8x16xf32>
    %44 = tpu.matmul %41, %42, %cst_29 {dimension_numbers = #tpu.dot_dimension_numbers<[1], [1], [0], [0], [0, 0, 1, 0], [], []>} : vector<8x8xf32>, vector<16x8xf32>, vector<8x16xf32> -> vector<8x16xf32>
    "tpu.trace_stop"() : () -> ()
    %cst_30 = arith.constant 0.353553385 : f32
    %45 = vector.broadcast %cst_30 : f32 to vector<8x16xf32>
    %46 = arith.mulf %44, %45 : vector<8x16xf32>
    %cst_31 = arith.constant dense<0xFF800000> : vector<8xf32>
    %47 = vector.multi_reduction <maximumf>, %46, %cst_31 [1] : vector<8x16xf32> to vector<8xf32>
    %48 = vector.shape_cast %47 : vector<8xf32> to vector<8x1xf32>
    %49 = vector.broadcast %48 : vector<8x1xf32> to vector<8x16xf32>
    %50 = arith.subf %46, %49 : vector<8x16xf32>
    %51 = math.exp %50 : vector<8x16xf32>
    %cst_32 = arith.constant dense<0.000000e+00> : vector<8xf32>
    %52 = vector.multi_reduction <add>, %51, %cst_32 [1] : vector<8x16xf32> to vector<8xf32>
    %53 = vector.shape_cast %52 : vector<8xf32> to vector<8x1xf32>
    %54 = vector.broadcast %53 : vector<8x1xf32> to vector<8x16xf32>
    %55 = arith.divf %51, %54 : vector<8x16xf32>
    %cst_33 = arith.constant dense<0.000000e+00> : vector<8x8xf32>
    %56 = tpu.matmul %55, %43, %cst_33 {dimension_numbers = #tpu.dot_dimension_numbers<[1], [0], [0], [1], [0, 0, 1, 1], [], []>} : vector<8x16xf32>, vector<16x8xf32>, vector<8x8xf32> -> vector<8x8xf32>
    %57 = vector.extract_strided_slice %19 {offsets = [8, 0], sizes = [8, 32], strides = [1, 1]} : vector<32x32xf32> to vector<8x32xf32>
    %cst_34 = arith.constant dense<0.000000e+00> : vector<8x32xf32>
    %58 = tpu.matmul %56, %57, %cst_34 {dimension_numbers = #tpu.dot_dimension_numbers<[1], [0], [0], [1], [0, 0, 1, 1], [], []>} : vector<8x8xf32>, vector<8x32xf32>, vector<8x32xf32> -> vector<8x32xf32>
    %59 = arith.addf %40, %58 : vector<8x32xf32>
    %60 = vector.extract_strided_slice %8 {offsets = [0, 16], sizes = [8, 8], strides = [1, 1]} : vector<8x32xf32> to vector<8x8xf32>
    %61 = vector.extract_strided_slice %13 {offsets = [0, 16], sizes = [16, 8], strides = [1, 1]} : vector<16x32xf32> to vector<16x8xf32>
    %62 = vector.extract_strided_slice %18 {offsets = [0, 16], sizes = [16, 8], strides = [1, 1]} : vector<16x32xf32> to vector<16x8xf32>
    "tpu.trace_start"() <{level = 10 : i32, message = "ld,sd->ls"}> : () -> ()
    %cst_35 = arith.constant dense<0.000000e+00> : vector<8x16xf32>
    %63 = tpu.matmul %60, %61, %cst_35 {dimension_numbers = #tpu.dot_dimension_numbers<[1], [1], [0], [0], [0, 0, 1, 0], [], []>} : vector<8x8xf32>, vector<16x8xf32>, vector<8x16xf32> -> vector<8x16xf32>
    "tpu.trace_stop"() : () -> ()
    %cst_36 = arith.constant 0.353553385 : f32
    %64 = vector.broadcast %cst_36 : f32 to vector<8x16xf32>
    %65 = arith.mulf %63, %64 : vector<8x16xf32>
    %cst_37 = arith.constant dense<0xFF800000> : vector<8xf32>
    %66 = vector.multi_reduction <maximumf>, %65, %cst_37 [1] : vector<8x16xf32> to vector<8xf32>
    %67 = vector.shape_cast %66 : vector<8xf32> to vector<8x1xf32>
    %68 = vector.broadcast %67 : vector<8x1xf32> to vector<8x16xf32>
    %69 = arith.subf %65, %68 : vector<8x16xf32>
    %70 = math.exp %69 : vector<8x16xf32>
    %cst_38 = arith.constant dense<0.000000e+00> : vector<8xf32>
    %71 = vector.multi_reduction <add>, %70, %cst_38 [1] : vector<8x16xf32> to vector<8xf32>
    %72 = vector.shape_cast %71 : vector<8xf32> to vector<8x1xf32>
    %73 = vector.broadcast %72 : vector<8x1xf32> to vector<8x16xf32>
    %74 = arith.divf %70, %73 : vector<8x16xf32>
    %cst_39 = arith.constant dense<0.000000e+00> : vector<8x8xf32>
    %75 = tpu.matmul %74, %62, %cst_39 {dimension_numbers = #tpu.dot_dimension_numbers<[1], [0], [0], [1], [0, 0, 1, 1], [], []>} : vector<8x16xf32>, vector<16x8xf32>, vector<8x8xf32> -> vector<8x8xf32>
    %76 = vector.extract_strided_slice %19 {offsets = [16, 0], sizes = [8, 32], strides = [1, 1]} : vector<32x32xf32> to vector<8x32xf32>
    %cst_40 = arith.constant dense<0.000000e+00> : vector<8x32xf32>
    %77 = tpu.matmul %75, %76, %cst_40 {dimension_numbers = #tpu.dot_dimension_numbers<[1], [0], [0], [1], [0, 0, 1, 1], [], []>} : vector<8x8xf32>, vector<8x32xf32>, vector<8x32xf32> -> vector<8x32xf32>
    %78 = arith.addf %59, %77 : vector<8x32xf32>
    %79 = vector.extract_strided_slice %8 {offsets = [0, 24], sizes = [8, 8], strides = [1, 1]} : vector<8x32xf32> to vector<8x8xf32>
    %80 = vector.extract_strided_slice %13 {offsets = [0, 24], sizes = [16, 8], strides = [1, 1]} : vector<16x32xf32> to vector<16x8xf32>
    %81 = vector.extract_strided_slice %18 {offsets = [0, 24], sizes = [16, 8], strides = [1, 1]} : vector<16x32xf32> to vector<16x8xf32>
    "tpu.trace_start"() <{level = 10 : i32, message = "ld,sd->ls"}> : () -> ()
    %cst_41 = arith.constant dense<0.000000e+00> : vector<8x16xf32>
    %82 = tpu.matmul %79, %80, %cst_41 {dimension_numbers = #tpu.dot_dimension_numbers<[1], [1], [0], [0], [0, 0, 1, 0], [], []>} : vector<8x8xf32>, vector<16x8xf32>, vector<8x16xf32> -> vector<8x16xf32>
    "tpu.trace_stop"() : () -> ()
    %cst_42 = arith.constant 0.353553385 : f32
    %83 = vector.broadcast %cst_42 : f32 to vector<8x16xf32>
    %84 = arith.mulf %82, %83 : vector<8x16xf32>
    %cst_43 = arith.constant dense<0xFF800000> : vector<8xf32>
    %85 = vector.multi_reduction <maximumf>, %84, %cst_43 [1] : vector<8x16xf32> to vector<8xf32>
    %86 = vector.shape_cast %85 : vector<8xf32> to vector<8x1xf32>
    %87 = vector.broadcast %86 : vector<8x1xf32> to vector<8x16xf32>
    %88 = arith.subf %84, %87 : vector<8x16xf32>
    %89 = math.exp %88 : vector<8x16xf32>
    %cst_44 = arith.constant dense<0.000000e+00> : vector<8xf32>
    %90 = vector.multi_reduction <add>, %89, %cst_44 [1] : vector<8x16xf32> to vector<8xf32>
    %91 = vector.shape_cast %90 : vector<8xf32> to vector<8x1xf32>
    %92 = vector.broadcast %91 : vector<8x1xf32> to vector<8x16xf32>
    %93 = arith.divf %89, %92 : vector<8x16xf32>
    %cst_45 = arith.constant dense<0.000000e+00> : vector<8x8xf32>
    %94 = tpu.matmul %93, %81, %cst_45 {dimension_numbers = #tpu.dot_dimension_numbers<[1], [0], [0], [1], [0, 0, 1, 1], [], []>} : vector<8x16xf32>, vector<16x8xf32>, vector<8x8xf32> -> vector<8x8xf32>
    %95 = vector.extract_strided_slice %19 {offsets = [24, 0], sizes = [8, 32], strides = [1, 1]} : vector<32x32xf32> to vector<8x32xf32>
    %cst_46 = arith.constant dense<0.000000e+00> : vector<8x32xf32>
    %96 = tpu.matmul %94, %95, %cst_46 {dimension_numbers = #tpu.dot_dimension_numbers<[1], [0], [0], [1], [0, 0, 1, 1], [], []>} : vector<8x8xf32>, vector<8x32xf32>, vector<8x32xf32> -> vector<8x32xf32>
    %97 = arith.addf %78, %96 : vector<8x32xf32>
    %98 = arith.addf %1, %97 : vector<8x32xf32>
    %cst_47 = arith.constant dense<0.000000e+00> : vector<8xf32>
    %99 = vector.multi_reduction <add>, %98, %cst_47 [1] : vector<8x32xf32> to vector<8xf32>
    %100 = vector.shape_cast %99 : vector<8xf32> to vector<8x1xf32>
    %cst_48 = arith.constant 3.200000e+01 : f32
    %101 = vector.broadcast %cst_48 : f32 to vector<8x1xf32>
    %102 = arith.divf %100, %101 : vector<8x1xf32>
    %103 = vector.broadcast %102 : vector<8x1xf32> to vector<8x32xf32>
    %104 = arith.subf %98, %103 : vector<8x32xf32>
    %105 = arith.mulf %104, %104 : vector<8x32xf32>
    %cst_49 = arith.constant dense<0.000000e+00> : vector<8xf32>
    %106 = vector.multi_reduction <add>, %105, %cst_49 [1] : vector<8x32xf32> to vector<8xf32>
    %107 = vector.shape_cast %106 : vector<8xf32> to vector<8x1xf32>
    %cst_50 = arith.constant 3.200000e+01 : f32
    %108 = vector.broadcast %cst_50 : f32 to vector<8x1xf32>
    %109 = arith.divf %107, %108 : vector<8x1xf32>
    %cst_51 = arith.constant 9.99999974E-6 : f32
    %110 = vector.broadcast %cst_51 : f32 to vector<8x1xf32>
    %111 = arith.addf %109, %110 : vector<8x1xf32>
    %112 = math.rsqrt %111 : vector<8x1xf32>
    %113 = vector.broadcast %112 : vector<8x1xf32> to vector<8x32xf32>
    %114 = arith.mulf %104, %113 : vector<8x32xf32>
    %c0_52 = arith.constant 0 : index
    %c0_53 = arith.constant 0 : index
    %115 = vector.load %arg11[%c0_52, %c0_53] : memref<1x32xf32, #tpu.memory_space<vmem>>, vector<1x32xf32>
    %116 = vector.broadcast %115 : vector<1x32xf32> to vector<8x32xf32>
    %117 = arith.mulf %114, %116 : vector<8x32xf32>
    %c0_54 = arith.constant 0 : index
    %c0_55 = arith.constant 0 : index
    %118 = vector.load %arg12[%c0_54, %c0_55] : memref<1x32xf32, #tpu.memory_space<vmem>>, vector<1x32xf32>
    %119 = vector.broadcast %118 : vector<1x32xf32> to vector<8x32xf32>
    %120 = arith.addf %117, %119 : vector<8x32xf32>
    %c0_56 = arith.constant 0 : index
    %c0_57 = arith.constant 0 : index
    %c0_58 = arith.constant 0 : index
    %121 = vector.load %arg13[%c0_56, %c0_57, %c0_58] : memref<1x8x32xf32, #tpu.memory_space<vmem>>, vector<1x8x32xf32>
    %122 = vector.shape_cast %121 : vector<1x8x32xf32> to vector<8x32xf32>
    %123 = vector.shape_cast %120 : vector<8x32xf32> to vector<1x8x32xf32>
    tpu.vector_store %arg13[%c0_56, %c0_57, %c0_58], %123 {strides = array<i32>} : memref<1x8x32xf32, #tpu.memory_space<vmem>>, vector<1x8x32xf32>,
    return
  }
  func.func @transform_0(%arg0: i32) -> (i32, i32, i32) {
    %c0_i32 = arith.constant 0 : i32
    %c0_i32_0 = arith.constant 0 : i32
    %c0_i32_1 = arith.constant 0 : i32
    return %arg0, %c0_i32, %c0_i32_0 : i32, i32, i32
  }
  func.func @transform_1(%arg0: i32) -> (i32, i32, i32) {
    %c0_i32 = arith.constant 0 : i32
    %c0_i32_0 = arith.constant 0 : i32
    %c0_i32_1 = arith.constant 0 : i32
    return %arg0, %c0_i32, %c0_i32_0 : i32, i32, i32
  }
  func.func @transform_2(%arg0: i32) -> (i32, i32) {
    %c0_i32 = arith.constant 0 : i32
    %c0_i32_0 = arith.constant 0 : i32
    %c0_i32_1 = arith.constant 0 : i32
    return %c0_i32, %c0_i32_0 : i32, i32
  }
  func.func @transform_3(%arg0: i32) -> (i32, i32) {
    %c0_i32 = arith.constant 0 : i32
    %c0_i32_0 = arith.constant 0 : i32
    %c0_i32_1 = arith.constant 0 : i32
    return %c0_i32, %c0_i32_0 : i32, i32
  }
  func.func @transform_4(%arg0: i32) -> (i32, i32) {
    %c0_i32 = arith.constant 0 : i32
    %c0_i32_0 = arith.constant 0 : i32
    %c0_i32_1 = arith.constant 0 : i32
    return %c0_i32, %c0_i32_0 : i32, i32
  }
  func.func @transform_5(%arg0: i32) -> (i32, i32) {
    %c0_i32 = arith.constant 0 : i32
    %c0_i32_0 = arith.constant 0 : i32
    %c0_i32_1 = arith.constant 0 : i32
    return %c0_i32, %c0_i32_0 : i32, i32
  }
  func.func @transform_6(%arg0: i32) -> (i32, i32) {
    %c0_i32 = arith.constant 0 : i32
    %c0_i32_0 = arith.constant 0 : i32
    %c0_i32_1 = arith.constant 0 : i32
    return %c0_i32, %c0_i32_0 : i32, i32
  }
  func.func @transform_7(%arg0: i32) -> (i32, i32) {
    %c0_i32 = arith.constant 0 : i32
    %c0_i32_0 = arith.constant 0 : i32
    %c0_i32_1 = arith.constant 0 : i32
    return %c0_i32, %c0_i32_0 : i32, i32
  }
  func.func @transform_8(%arg0: i32) -> (i32, i32) {
    %c0_i32 = arith.constant 0 : i32
    %c0_i32_0 = arith.constant 0 : i32
    %c0_i32_1 = arith.constant 0 : i32
    return %c0_i32, %c0_i32_0 : i32, i32
  }
  func.func @transform_9(%arg0: i32) -> (i32, i32) {
    %c0_i32 = arith.constant 0 : i32
    %c0_i32_0 = arith.constant 0 : i32
    %c0_i32_1 = arith.constant 0 : i32
    return %c0_i32, %c0_i32_0 : i32, i32
  }
  func.func @transform_10(%arg0: i32) -> (i32, i32) {
    %c0_i32 = arith.constant 0 : i32
    %c0_i32_0 = arith.constant 0 : i32
    %c0_i32_1 = arith.constant 0 : i32
    return %c0_i32, %c0_i32_0 : i32, i32
  }
  func.func @transform_11(%arg0: i32) -> (i32, i32) {
    %c0_i32 = arith.constant 0 : i32
    %c0_i32_0 = arith.constant 0 : i32
    %c0_i32_1 = arith.constant 0 : i32
    return %c0_i32, %c0_i32_0 : i32, i32
  }
  func.func @transform_12(%arg0: i32) -> (i32, i32, i32) {
    %c0_i32 = arith.constant 0 : i32
    %c0_i32_0 = arith.constant 0 : i32
    %c0_i32_1 = arith.constant 0 : i32
    return %arg0, %c0_i32, %c0_i32_0 : i32, i32, i32
  }
}

</mosaic_0001>

<llo_original>
// kernel: tpu_custom_call.1
$region0: #{tpu_custom_call.1}
  #allocation0 [shape = 'u32[]', space=smem, size = 0x4, offset = 0x4, fixed_abs, tag = 'smem constant byte address 0x4 - core index']
  #allocation1 [shape = 'u32[144,128]{1,0:T(1,128)}', space=vmem, size = 0x12000, scoped, tag = 'internal scratch']
  %s0 = inlined_call_operand.hbm [shape: f32[2,8,32], index: 0, kind: input, shape index: {}]
  %s1 = inlined_call_operand.hbm [shape: f32[2,16,32], index: 1, kind: input, shape index: {}]
  %s2 = inlined_call_operand.hbm [shape: f32[32,32], index: 2, kind: input, shape index: {}]
  %s3 = inlined_call_operand.vmem [shape: f32[1,32], index: 3, kind: input, shape index: {}]
  %s4 = inlined_call_operand.hbm [shape: f32[32,32], index: 4, kind: input, shape index: {}]
  %s5 = inlined_call_operand.vmem [shape: f32[1,32], index: 5, kind: input, shape index: {}]
  %s6 = inlined_call_operand.hbm [shape: f32[32,32], index: 6, kind: input, shape index: {}]
  %s7 = inlined_call_operand.vmem [shape: f32[1,32], index: 7, kind: input, shape index: {}]
  %s8 = inlined_call_operand.hbm [shape: f32[32,32], index: 8, kind: input, shape index: {}]
  %s9 = inlined_call_operand.vmem [shape: f32[1,32], index: 9, kind: input, shape index: {}]
  %s10 = inlined_call_operand.vmem [shape: f32[1,32], index: 10, kind: input, shape index: {}]
  %s11 = inlined_call_operand.vmem [shape: f32[1,32], index: 11, kind: input, shape index: {}]
  %s12 = inlined_call_operand.hbm [shape: f32[2,8,32], index: 12, kind: output, shape index: {}]
  %s13 = sld [smem:[#allocation0]]
  $region105: #{tpu_custom_call.1} parent=0
    _
  %s15 = ssub.s32 1, %s13
  %s16 = scalar_select 0, %s15, %s13
  $region1: #{tpu_custom_call.1} parent=0
    #allocation2 [shape = 'u8[8192]{0}', space=vmem, size = 0x2000, scoped, tag = 'input window, operand 0']
    #allocation3 [shape = 's32[2]{0}', space=sflag, size = 0x8, scoped, tag = 'scoped memory for tpu_custom_call.1']
    #allocation4 [shape = 's32[2]{0}', space=sflag, size = 0x8, scoped, tag = 'scoped memory for tpu_custom_call.1']
    #allocation5 [shape = 'u8[16384]{0}', space=vmem, size = 0x4000, scoped, tag = 'input window, operand 1']
    #allocation6 [shape = 's32[2]{0}', space=sflag, size = 0x8, scoped, tag = 'scoped memory for tpu_custom_call.1']
    #allocation7 [shape = 'u8[16384]{0}', space=vmem, size = 0x4000, scoped, tag = 'input window, operand 2, single buffered']
    #allocation8 [shape = 'u8[16384]{0}', space=vmem, size = 0x4000, scoped, tag = 'input window, operand 4, single buffered']
    #allocation9 [shape = 's32[1]{0}', space=sflag, size = 0x4, scoped, tag = 'scoped memory for tpu_custom_call.1']
    #allocation10 [shape = 'u8[16384]{0}', space=vmem, size = 0x4000, scoped, tag = 'input window, operand 6, single buffered']
    #allocation11 [shape = 'u8[16384]{0}', space=vmem, size = 0x4000, scoped, tag = 'input window, operand 8, single buffered']
    #allocation12 [shape = 's32[1]{0}', space=sflag, size = 0x4, scoped, tag = 'scoped memory for tpu_custom_call.1']
    #allocation13 [shape = 'u8[8192]{0}', space=vmem, size = 0x2000, scoped, tag = 'output window, operand 0']
    %17 = vsyncpa [#allocation3], 0
    %s18 = scalar_lea.sflag [#allocation3], 1
    %19 = vsyncpa %s18, 0
    %20 = vsyncpa [#allocation6], 0
    %s21 = scalar_lea.sflag [#allocation6], 1
    %22 = vsyncpa %s21, 0
    %23 = vsyncpa [#allocation9], 0
    %24 = vsyncpa [#allocation12], 0
    %25 = vsyncpa [#allocation4], 0
    %s26 = scalar_lea.sflag [#allocation4], 1
    %27 = vsyncpa %s26, 0
    loop: start=0, step=1, limit=4
    $region2: #{tpu_custom_call.1} parent=1 // loop_pre_header
      _
    $region3: #{tpu_custom_call.1} parent=1 // loop_header
      %s29 = sphi 0, %s33
      %p30 = scmp.ge.s32.totalorder %s29, 4
      %s39 = sphi 0, %s41
      %s42 = sphi 0, %s39
      %s43 = sphi 0, %s42
      %s59 = sphi 0, %s43
      %s65 = sphi 0, %s67
      %s68 = sphi 0, %s65
      %s69 = sphi 0, %s68
      %s85 = sphi 0, %s69
      %s89 = sphi 0, %s89
      %s91 = sphi 0, %s89
      %s92 = sphi 0, %s91
      %s106 = sphi 0, %s92
      %s110 = sphi 0, %s110
      %s112 = sphi 0, %s110
      %s113 = sphi 0, %s112
      %s127 = sphi 0, %s113
      %s131 = sphi 0, %s131
      %s133 = sphi 0, %s131
      %s134 = sphi 0, %s133
      %s148 = sphi 0, %s134
      %s152 = sphi 0, %s152
      %s154 = sphi 0, %s152
      %s155 = sphi 0, %s154
      %s169 = sphi 0, %s155
      %s173 = sphi 0, %s173
      %s175 = sphi 0, %s173
      %s176 = sphi 0, %s175
      %s190 = sphi 0, %s176
      %s194 = sphi 0, %s194
      %s196 = sphi 0, %s194
      %s197 = sphi 0, %s196
      %s211 = sphi 0, %s197
      %s215 = sphi 0, %s215
      %s217 = sphi 0, %s215
      %s218 = sphi 0, %s217
      %s232 = sphi 0, %s218
      %s236 = sphi 0, %s236
      %s238 = sphi 0, %s236
      %s239 = sphi 0, %s238
      %s253 = sphi 0, %s239
      %s257 = sphi 0, %s257
      %s259 = sphi 0, %s257
      %s260 = sphi 0, %s259
      %s274 = sphi 0, %s260
      %s278 = sphi 0, %s278
      %s280 = sphi 0, %s278
      %s281 = sphi 0, %s280
      %s295 = sphi 0, %s281
      %s301 = sphi 0, %s303
      %s304 = sphi 0, %s301
      %s305 = sphi 0, %s304
      %s321 = sphi 0, %s305
    $region4: #{tpu_custom_call.1} parent=1 // loop_header_branch
      %32 = sbr.rel (%p30) target = $region8
    $region5: #{tpu_custom_call.1} parent=1 // loop_body
      %s34 = ssub.s32 %s29, 1
      %s35 = ssub.s32 %s29, 2
      %s36 = sadd.s32 %s29, 1
      %s37 = ssub.s32 %s29, %s36
      %p38 = scmp.eq.s32.totalorder %s37, 0
      %s40 = sadd.s32 %s39, 1
      %s41 = scalar_select %p38, %s39, %s40
      %p44 = pneg %p38
      %p45 = scmp.eq.s32.totalorder %s29, 1
      %p46 = por %p44, %p45
      %p47 = scmp.ne.s32.totalorder %s39, %s42
      %p48 = scmp.eq.s32.totalorder %s29, 0
      %p49 = por %p47, %p48
      %p50 = scmp.ne.s32.totalorder %s39, %s42
      %p51 = scmp.eq.s32.totalorder %s34, 1
      %p52 = por %p50, %p51
      %p53 = scmp.ne.s32.totalorder %s42, %s43
      %p54 = scmp.eq.s32.totalorder %s34, 0
      %p55 = por %p53, %p54
      %p56 = scmp.ne.s32.totalorder %s42, %s43
      %p57 = scmp.eq.s32.totalorder %s35, 1
      %p58 = por %p56, %p57
      %p60 = scmp.ne.s32.totalorder %s43, %s59
      %p61 = scmp.eq.s32.totalorder %s35, 0
      %p62 = por %p60, %p61
      %s63 = ssub.s32 %s29, %s36
      %p64 = scmp.eq.s32.totalorder %s63, 0
      %s66 = sadd.s32 %s65, 1
      %s67 = scalar_select %p64, %s65, %s66
      %p70 = pneg %p64
      %p71 = scmp.eq.s32.totalorder %s29, 1
      %p72 = por %p70, %p71
      %p73 = scmp.ne.s32.totalorder %s65, %s68
      %p74 = scmp.eq.s32.totalorder %s29, 0
      %p75 = por %p73, %p74
      %p76 = scmp.ne.s32.totalorder %s65, %s68
      %p77 = scmp.eq.s32.totalorder %s34, 1
      %p78 = por %p76, %p77
      %p79 = scmp.ne.s32.totalorder %s68, %s69
      %p80 = scmp.eq.s32.totalorder %s34, 0
      %p81 = por %p79, %p80
      %p82 = scmp.ne.s32.totalorder %s68, %s69
      %p83 = scmp.eq.s32.totalorder %s35, 1
      %p84 = por %p82, %p83
      %p86 = scmp.ne.s32.totalorder %s69, %s85
      %p87 = scmp.eq.s32.totalorder %s35, 0
      %p88 = por %p86, %p87
      %s90 = sadd.s32 %s89, 1
      %p93 = scmp.eq.s32.totalorder %s29, 1
      %p94 = scmp.ne.s32.totalorder %s89, %s91
      %p95 = scmp.eq.s32.totalorder %s29, 0
      %p96 = por %p94, %p95
      %p97 = scmp.ne.s32.totalorder %s89, %s91
      %p98 = scmp.eq.s32.totalorder %s34, 1
      %p99 = por %p97, %p98
      %p100 = scmp.ne.s32.totalorder %s91, %s92
      %p101 = scmp.eq.s32.totalorder %s34, 0
      %p102 = por %p100, %p101
      %p103 = scmp.ne.s32.totalorder %s91, %s92
      %p104 = scmp.eq.s32.totalorder %s35, 1
      %p105 = por %p103, %p104
      %p107 = scmp.ne.s32.totalorder %s92, %s106
      %p108 = scmp.eq.s32.totalorder %s35, 0
      %p109 = por %p107, %p108
      %s111 = sadd.s32 %s110, 1
      %p114 = scmp.eq.s32.totalorder %s29, 1
      %p115 = scmp.ne.s32.totalorder %s110, %s112
      %p116 = scmp.eq.s32.totalorder %s29, 0
      %p117 = por %p115, %p116
      %p118 = scmp.ne.s32.totalorder %s110, %s112
      %p119 = scmp.eq.s32.totalorder %s34, 1
      %p120 = por %p118, %p119
      %p121 = scmp.ne.s32.totalorder %s112, %s113
      %p122 = scmp.eq.s32.totalorder %s34, 0
      %p123 = por %p121, %p122
      %p124 = scmp.ne.s32.totalorder %s112, %s113
      %p125 = scmp.eq.s32.totalorder %s35, 1
      %p126 = por %p124, %p125
      %p128 = scmp.ne.s32.totalorder %s113, %s127
      %p129 = scmp.eq.s32.totalorder %s35, 0
      %p130 = por %p128, %p129
      %s132 = sadd.s32 %s131, 1
      %p135 = scmp.eq.s32.totalorder %s29, 1
      %p136 = scmp.ne.s32.totalorder %s131, %s133
      %p137 = scmp.eq.s32.totalorder %s29, 0
      %p138 = por %p136, %p137
      %p139 = scmp.ne.s32.totalorder %s131, %s133
      %p140 = scmp.eq.s32.totalorder %s34, 1
      %p141 = por %p139, %p140
      %p142 = scmp.ne.s32.totalorder %s133, %s134
      %p143 = scmp.eq.s32.totalorder %s34, 0
      %p144 = por %p142, %p143
      %p145 = scmp.ne.s32.totalorder %s133, %s134
      %p146 = scmp.eq.s32.totalorder %s35, 1
      %p147 = por %p145, %p146
      %p149 = scmp.ne.s32.totalorder %s134, %s148
      %p150 = scmp.eq.s32.totalorder %s35, 0
      %p151 = por %p149, %p150
      %s153 = sadd.s32 %s152, 1
      %p156 = scmp.eq.s32.totalorder %s29, 1
      %p157 = scmp.ne.s32.totalorder %s152, %s154
      %p158 = scmp.eq.s32.totalorder %s29, 0
      %p159 = por %p157, %p158
      %p160 = scmp.ne.s32.totalorder %s152, %s154
      %p161 = scmp.eq.s32.totalorder %s34, 1
      %p162 = por %p160, %p161
      %p163 = scmp.ne.s32.totalorder %s154, %s155
      %p164 = scmp.eq.s32.totalorder %s34, 0
      %p165 = por %p163, %p164
      %p166 = scmp.ne.s32.totalorder %s154, %s155
      %p167 = scmp.eq.s32.totalorder %s35, 1
      %p168 = por %p166, %p167
      %p170 = scmp.ne.s32.totalorder %s155, %s169
      %p171 = scmp.eq.s32.totalorder %s35, 0
      %p172 = por %p170, %p171
      %s174 = sadd.s32 %s173, 1
      %p177 = scmp.eq.s32.totalorder %s29, 1
      %p178 = scmp.ne.s32.totalorder %s173, %s175
      %p179 = scmp.eq.s32.totalorder %s29, 0
      %p180 = por %p178, %p179
      %p181 = scmp.ne.s32.totalorder %s173, %s175
      %p182 = scmp.eq.s32.totalorder %s34, 1
      %p183 = por %p181, %p182
      %p184 = scmp.ne.s32.totalorder %s175, %s176
      %p185 = scmp.eq.s32.totalorder %s34, 0
      %p186 = por %p184, %p185
      %p187 = scmp.ne.s32.totalorder %s175, %s176
      %p188 = scmp.eq.s32.totalorder %s35, 1
      %p189 = por %p187, %p188
      %p191 = scmp.ne.s32.totalorder %s176, %s190
      %p192 = scmp.eq.s32.totalorder %s35, 0
      %p193 = por %p191, %p192
      %s195 = sadd.s32 %s194, 1
      %p198 = scmp.eq.s32.totalorder %s29, 1
      %p199 = scmp.ne.s32.totalorder %s194, %s196
      %p200 = scmp.eq.s32.totalorder %s29, 0
      %p201 = por %p199, %p200
      %p202 = scmp.ne.s32.totalorder %s194, %s196
      %p203 = scmp.eq.s32.totalorder %s34, 1
      %p204 = por %p202, %p203
      %p205 = scmp.ne.s32.totalorder %s196, %s197
      %p206 = scmp.eq.s32.totalorder %s34, 0
      %p207 = por %p205, %p206
      %p208 = scmp.ne.s32.totalorder %s196, %s197
      %p209 = scmp.eq.s32.totalorder %s35, 1
      %p210 = por %p208, %p209
      %p212 = scmp.ne.s32.totalorder %s197, %s211
      %p213 = scmp.eq.s32.totalorder %s35, 0
      %p214 = por %p212, %p213
      %s216 = sadd.s32 %s215, 1
      %p219 = scmp.eq.s32.totalorder %s29, 1
      %p220 = scmp.ne.s32.totalorder %s215, %s217
      %p221 = scmp.eq.s32.totalorder %s29, 0
      %p222 = por %p220, %p221
      %p223 = scmp.ne.s32.totalorder %s215, %s217
      %p224 = scmp.eq.s32.totalorder %s34, 1
      %p225 = por %p223, %p224
      %p226 = scmp.ne.s32.totalorder %s217, %s218
      %p227 = scmp.eq.s32.totalorder %s34, 0
      %p228 = por %p226, %p227
      %p229 = scmp.ne.s32.totalorder %s217, %s218
      %p230 = scmp.eq.s32.totalorder %s35, 1
      %p231 = por %p229, %p230
      %p233 = scmp.ne.s32.totalorder %s218, %s232
      %p234 = scmp.eq.s32.totalorder %s35, 0
      %p235 = por %p233, %p234
      %s237 = sadd.s32 %s236, 1
      %p240 = scmp.eq.s32.totalorder %s29, 1
      %p241 = scmp.ne.s32.totalorder %s236, %s238
      %p242 = scmp.eq.s32.totalorder %s29, 0
      %p243 = por %p241, %p242
      %p244 = scmp.ne.s32.totalorder %s236, %s238
      %p245 = scmp.eq.s32.totalorder %s34, 1
      %p246 = por %p244, %p245
      %p247 = scmp.ne.s32.totalorder %s238, %s239
      %p248 = scmp.eq.s32.totalorder %s34, 0
      %p249 = por %p247, %p248
      %p250 = scmp.ne.s32.totalorder %s238, %s239
      %p251 = scmp.eq.s32.totalorder %s35, 1
      %p252 = por %p250, %p251
      %p254 = scmp.ne.s32.totalorder %s239, %s253
      %p255 = scmp.eq.s32.totalorder %s35, 0
      %p256 = por %p254, %p255
      %s258 = sadd.s32 %s257, 1
      %p261 = scmp.eq.s32.totalorder %s29, 1
      %p262 = scmp.ne.s32.totalorder %s257, %s259
      %p263 = scmp.eq.s32.totalorder %s29, 0
      %p264 = por %p262, %p263
      %p265 = scmp.ne.s32.totalorder %s257, %s259
      %p266 = scmp.eq.s32.totalorder %s34, 1
      %p267 = por %p265, %p266
      %p268 = scmp.ne.s32.totalorder %s259, %s260
      %p269 = scmp.eq.s32.totalorder %s34, 0
      %p270 = por %p268, %p269
      %p271 = scmp.ne.s32.totalorder %s259, %s260
      %p272 = scmp.eq.s32.totalorder %s35, 1
      %p273 = por %p271, %p272
      %p275 = scmp.ne.s32.totalorder %s260, %s274
      %p276 = scmp.eq.s32.totalorder %s35, 0
      %p277 = por %p275, %p276
      %s279 = sadd.s32 %s278, 1
      %p282 = scmp.eq.s32.totalorder %s29, 1
      %p283 = scmp.ne.s32.totalorder %s278, %s280
      %p284 = scmp.eq.s32.totalorder %s29, 0
      %p285 = por %p283, %p284
      %p286 = scmp.ne.s32.totalorder %s278, %s280
      %p287 = scmp.eq.s32.totalorder %s34, 1
      %p288 = por %p286, %p287
      %p289 = scmp.ne.s32.totalorder %s280, %s281
      %p290 = scmp.eq.s32.totalorder %s34, 0
      %p291 = por %p289, %p290
      %p292 = scmp.ne.s32.totalorder %s280, %s281
      %p293 = scmp.eq.s32.totalorder %s35, 1
      %p294 = por %p292, %p293
      %p296 = scmp.ne.s32.totalorder %s281, %s295
      %p297 = scmp.eq.s32.totalorder %s35, 0
      %p298 = por %p296, %p297
      %s299 = ssub.s32 %s29, %s36
      %p300 = scmp.eq.s32.totalorder %s299, 0
      %s302 = sadd.s32 %s301, 1
      %s303 = scalar_select %p300, %s301, %s302
      %p306 = pneg %p300
      %p307 = scmp.eq.s32.totalorder %s29, 1
      %p308 = por %p306, %p307
      %p309 = scmp.ne.s32.totalorder %s301, %s304
      %p310 = scmp.eq.s32.totalorder %s29, 0
      %p311 = por %p309, %p310
      %p312 = scmp.ne.s32.totalorder %s301, %s304
      %p313 = scmp.eq.s32.totalorder %s34, 1
      %p314 = por %p312, %p313
      %p315 = scmp.ne.s32.totalorder %s304, %s305
      %p316 = scmp.eq.s32.totalorder %s34, 0
      %p317 = por %p315, %p316
      %p318 = scmp.ne.s32.totalorder %s304, %s305
      %p319 = scmp.eq.s32.totalorder %s35, 1
      %p320 = por %p318, %p319
      %p322 = scmp.ne.s32.totalorder %s305, %s321
      %p323 = scmp.eq.s32.totalorder %s35, 0
      %p324 = por %p322, %p323
      %p325 = scmp.le.s32.totalorder 1, %s29
      %p326 = scmp.lt.s32.totalorder %s29, 3
      %p327 = pnand %p325, %p326
      %p328 = pneg %p327
      // Predicated region
      $region9: #{tpu_custom_call.1} parent=5 // pred_check
        _
      $region10: #{tpu_custom_call.1} parent=5 // pred_check_branch
        %330 = sbr.rel (%p327) target = $region12
      $region11: #{tpu_custom_call.1} parent=5 // pred_region
        %s331 = ssub.s32 %s29, 1
        // Predicated region
        $region13: #{tpu_custom_call.1} parent=11 // pred_check
          %p332 = pneg %p102
        $region14: #{tpu_custom_call.1} parent=11 // pred_check_branch
          %334 = sbr.rel (%p332) target = $region16
        $region15: #{tpu_custom_call.1} parent=11 // pred_region
          %s336 = ssub.s32 512, 512
          %337 = vsyncadd [#allocation6], %s336
          %s338 = sshll.u32 [#allocation7], 4
          %s339 = int_to_ptr.vmem [resolvable:$true] %s338
          %344 = dma.hbm_to_vmem [thread:$0]  %s2, 512, %s339, [#allocation6], 128, 128, 8
        $region16: #{tpu_custom_call.1} parent=11 // pred_fallthru
          _
        // Predicated region
        $region17: #{tpu_custom_call.1} parent=11 // pred_check
          %p345 = pneg %p123
        $region18: #{tpu_custom_call.1} parent=11 // pred_check_branch
          %347 = sbr.rel (%p345) target = $region20
        $region19: #{tpu_custom_call.1} parent=11 // pred_region
          _
        $region20: #{tpu_custom_call.1} parent=11 // pred_fallthru
          _
        // Predicated region
        $region21: #{tpu_custom_call.1} parent=11 // pred_check
          %p348 = pneg %p144
        $region22: #{tpu_custom_call.1} parent=11 // pred_check_branch
          %350 = sbr.rel (%p348) target = $region24
        $region23: #{tpu_custom_call.1} parent=11 // pred_region
          %s352 = ssub.s32 512, 512
          %353 = vsyncadd [#allocation9], %s352
          %s354 = sshll.u32 [#allocation8], 4
          %s355 = int_to_ptr.vmem [resolvable:$true] %s354
          %360 = dma.hbm_to_vmem [thread:$0]  %s4, 512, %s355, [#allocation9], 128, 128, 8
        $region24: #{tpu_custom_call.1} parent=11 // pred_fallthru
          _
        // Predicated region
        $region25: #{tpu_custom_call.1} parent=11 // pred_check
          %p361 = pneg %p165
        $region26: #{tpu_custom_call.1} parent=11 // pred_check_branch
          %363 = sbr.rel (%p361) target = $region28
        $region27: #{tpu_custom_call.1} parent=11 // pred_region
          _
        $region28: #{tpu_custom_call.1} parent=11 // pred_fallthru
          _
        // Predicated region
        $region29: #{tpu_custom_call.1} parent=11 // pred_check
          %p364 = pneg %p186
        $region30: #{tpu_custom_call.1} parent=11 // pred_check_branch
          %366 = sbr.rel (%p364) target = $region32
        $region31: #{tpu_custom_call.1} parent=11 // pred_region
          %s368 = ssub.s32 512, 512
          %369 = vsyncadd [#allocation9], %s368
          %s370 = sshll.u32 [#allocation10], 4
          %s371 = int_to_ptr.vmem [resolvable:$true] %s370
          %376 = dma.hbm_to_vmem [thread:$0]  %s6, 512, %s371, [#allocation9], 128, 128, 8
        $region32: #{tpu_custom_call.1} parent=11 // pred_fallthru
          _
        // Predicated region
        $region33: #{tpu_custom_call.1} parent=11 // pred_check
          %p377 = pneg %p207
        $region34: #{tpu_custom_call.1} parent=11 // pred_check_branch
          %379 = sbr.rel (%p377) target = $region36
        $region35: #{tpu_custom_call.1} parent=11 // pred_region
          _
        $region36: #{tpu_custom_call.1} parent=11 // pred_fallthru
          _
        // Predicated region
        $region37: #{tpu_custom_call.1} parent=11 // pred_check
          %p380 = pneg %p228
        $region38: #{tpu_custom_call.1} parent=11 // pred_check_branch
          %382 = sbr.rel (%p380) target = $region40
        $region39: #{tpu_custom_call.1} parent=11 // pred_region
          %s384 = ssub.s32 512, 512
          %385 = vsyncadd [#allocation12], %s384
          %s386 = sshll.u32 [#allocation11], 4
          %s387 = int_to_ptr.vmem [resolvable:$true] %s386
          %392 = dma.hbm_to_vmem [thread:$0]  %s8, 512, %s387, [#allocation12], 128, 128, 8
        $region40: #{tpu_custom_call.1} parent=11 // pred_fallthru
          _
        // Predicated region
        $region41: #{tpu_custom_call.1} parent=11 // pred_check
          %p393 = pneg %p249
        $region42: #{tpu_custom_call.1} parent=11 // pred_check_branch
          %395 = sbr.rel (%p393) target = $region44
        $region43: #{tpu_custom_call.1} parent=11 // pred_region
          _
        $region44: #{tpu_custom_call.1} parent=11 // pred_fallthru
          _
        // Predicated region
        $region45: #{tpu_custom_call.1} parent=11 // pred_check
          %p396 = pneg %p270
        $region46: #{tpu_custom_call.1} parent=11 // pred_check_branch
          %398 = sbr.rel (%p396) target = $region48
        $region47: #{tpu_custom_call.1} parent=11 // pred_region
          _
        $region48: #{tpu_custom_call.1} parent=11 // pred_fallthru
          _
        // Predicated region
        $region49: #{tpu_custom_call.1} parent=11 // pred_check
          %p399 = pneg %p291
        $region50: #{tpu_custom_call.1} parent=11 // pred_check_branch
          %401 = sbr.rel (%p399) target = $region52
        $region51: #{tpu_custom_call.1} parent=11 // pred_region
          _
        $region52: #{tpu_custom_call.1} parent=11 // pred_fallthru
          _
      $region12: #{tpu_custom_call.1} parent=5 // pred_fallthru
        _
      %p402 = scmp.lt.s32.totalorder %s29, 2
      // Predicated region
      $region53: #{tpu_custom_call.1} parent=5 // pred_check
        %p403 = pneg %p402
      $region54: #{tpu_custom_call.1} parent=5 // pred_check_branch
        %405 = sbr.rel (%p403) target = $region56
      $region55: #{tpu_custom_call.1} parent=5 // pred_region
        // Predicated region
        $region57: #{tpu_custom_call.1} parent=55 // pred_check
          %p406 = pneg %p49
        $region58: #{tpu_custom_call.1} parent=55 // pred_check_branch
          %408 = sbr.rel (%p406) target = $region60
        $region59: #{tpu_custom_call.1} parent=55 // pred_region
          %s409 = sand.u32 %s39, 1
          %s410 = scalar_lea.sflag [#allocation3], %s409
          %s411 = sand.u32 %s39, 1
          %s412 = smul.addr %s411, 8
          %s413 = scalar_lea.vmem [#allocation2], %s412
          %s415 = ssub.s32 128, 128
          %416 = vsyncadd %s410, %s415
          %s417 = smul.addr %s29, 128
          %s418 = scalar_lea.hbm %s0, %s417
          %s420 = sshll.u32 %s413, 4
          %s421 = int_to_ptr.vmem [resolvable:$true] %s420
          %423 = dma.hbm_to_vmem [thread:$0]  %s418, 128, %s421, %s410
        $region60: #{tpu_custom_call.1} parent=55 // pred_fallthru
          _
        // Predicated region
        $region61: #{tpu_custom_call.1} parent=55 // pred_check
          %p424 = pneg %p75
        $region62: #{tpu_custom_call.1} parent=55 // pred_check_branch
          %426 = sbr.rel (%p424) target = $region64
        $region63: #{tpu_custom_call.1} parent=55 // pred_region
          %s427 = sand.u32 %s29, 1
          %s428 = scalar_lea.sflag [#allocation6], %s427
          %s429 = sand.u32 %s65, 1
          %s430 = smul.addr %s429, 16
          %s431 = scalar_lea.vmem [#allocation5], %s430
          %s433 = ssub.s32 256, 256
          %434 = vsyncadd %s428, %s433
          %s435 = smul.addr %s29, 2
          %s436 = smul.addr %s435, 128
          %s437 = scalar_lea.hbm %s1, %s436
          %s438 = sshll.u32 %s431, 4
          %s439 = int_to_ptr.vmem [resolvable:$true] %s438
          %444 = dma.hbm_to_vmem [thread:$0]  %s437, 256, %s439, %s428, 128, 128, 8
        $region64: #{tpu_custom_call.1} parent=55 // pred_fallthru
          _
      $region56: #{tpu_custom_call.1} parent=5 // pred_fallthru
        _
      %p445 = scmp.le.s32.totalorder 1, %s29
      %p446 = scmp.lt.s32.totalorder %s29, 3
      %p447 = pnand %p445, %p446
      %p448 = pneg %p447
      // Predicated region
      $region65: #{tpu_custom_call.1} parent=5 // pred_check
        _
      $region66: #{tpu_custom_call.1} parent=5 // pred_check_branch
        %450 = sbr.rel (%p447) target = $region68
      $region67: #{tpu_custom_call.1} parent=5 // pred_region
        %s451 = ssub.s32 %s29, 1
        %s452 = sand.u32 %s42, 1
        %s453 = scalar_lea.sflag [#allocation3], %s452
        %s454 = sand.u32 %s42, 1
        %s455 = smul.addr %s454, 8
        %s456 = scalar_lea.vmem [#allocation2], %s455
        // Predicated region
        $region69: #{tpu_custom_call.1} parent=67 // pred_check
          %p457 = pneg %p55
        $region70: #{tpu_custom_call.1} parent=67 // pred_check_branch
          %459 = sbr.rel (%p457) target = $region72
        $region71: #{tpu_custom_call.1} parent=67 // pred_region
          %460 = dma.done %s453, 128
        $region72: #{tpu_custom_call.1} parent=67 // pred_fallthru
          _
        %s461 = sand.u32 %s34, 1
        %s462 = scalar_lea.sflag [#allocation6], %s461
        %s463 = sand.u32 %s68, 1
        %s464 = smul.addr %s463, 16
        %s465 = scalar_lea.vmem [#allocation5], %s464
        // Predicated region
        $region73: #{tpu_custom_call.1} parent=67 // pred_check
          %p466 = pneg %p81
        $region74: #{tpu_custom_call.1} parent=67 // pred_check_branch
          %468 = sbr.rel (%p466) target = $region76
        $region75: #{tpu_custom_call.1} parent=67 // pred_region
          %469 = dma.done %s462, 256
        $region76: #{tpu_custom_call.1} parent=67 // pred_fallthru
          _
        // Predicated region
        $region77: #{tpu_custom_call.1} parent=67 // pred_check
          %p470 = pneg %p102
        $region78: #{tpu_custom_call.1} parent=67 // pred_check_branch
          %472 = sbr.rel (%p470) target = $region80
        $region79: #{tpu_custom_call.1} parent=67 // pred_region
          %473 = dma.done [#allocation6], 512
        $region80: #{tpu_custom_call.1} parent=67 // pred_fallthru
          _
        // Predicated region
        $region81: #{tpu_custom_call.1} parent=67 // pred_check
          %p474 = pneg %p144
        $region82: #{tpu_custom_call.1} parent=67 // pred_check_branch
          %476 = sbr.rel (%p474) target = $region84
        $region83: #{tpu_custom_call.1} parent=67 // pred_region
          %477 = dma.done [#allocation9], 512
        $region84: #{tpu_custom_call.1} parent=67 // pred_fallthru
          _
        // Predicated region
        $region85: #{tpu_custom_call.1} parent=67 // pred_check
          %p478 = pneg %p186
        $region86: #{tpu_custom_call.1} parent=67 // pred_check_branch
          %480 = sbr.rel (%p478) target = $region88
        $region87: #{tpu_custom_call.1} parent=67 // pred_region
          %481 = dma.done [#allocation9], 512
        $region88: #{tpu_custom_call.1} parent=67 // pred_fallthru
          _
        // Predicated region
        $region89: #{tpu_custom_call.1} parent=67 // pred_check
          %p482 = pneg %p228
        $region90: #{tpu_custom_call.1} parent=67 // pred_check_branch
          %484 = sbr.rel (%p482) target = $region92
        $region91: #{tpu_custom_call.1} parent=67 // pred_region
          %485 = dma.done [#allocation12], 512
        $region92: #{tpu_custom_call.1} parent=67 // pred_fallthru
          _
        %s486 = sand.u32 %s42, 1
        %s487 = scalar_lea.sflag [#allocation3], %s486
        %s488 = sand.u32 %s42, 1
        %s489 = smul.addr %s488, 8
        %s490 = scalar_lea.vmem [#allocation2], %s489
        %p491 = pneg %p55
        %p492 = pneg %p52
        %s493 = sand.u32 %s34, 1
        %s494 = scalar_lea.sflag [#allocation6], %s493
        %s495 = sand.u32 %s68, 1
        %s496 = smul.addr %s495, 16
        %s497 = scalar_lea.vmem [#allocation5], %s496
        %p498 = pneg %p81
        %p499 = pneg %p78
        %p500 = pneg %p102
        %p501 = pneg %p99
        %p502 = pneg %p123
        %p503 = pneg %p120
        %p504 = pneg %p144
        %p505 = pneg %p141
        %p506 = pneg %p165
        %p507 = pneg %p162
        %p508 = pneg %p186
        %p509 = pneg %p183
        %p510 = pneg %p207
        %p511 = pneg %p204
        %p512 = pneg %p228
        %p513 = pneg %p225
        %p514 = pneg %p249
        %p515 = pneg %p246
        %p516 = pneg %p270
        %p517 = pneg %p267
        %p518 = pneg %p291
        %p519 = pneg %p288
        %p520 = pneg %p317
        %p521 = pneg %p314
        %s522 = sand.u32 %s304, 1
        %s523 = scalar_lea.sflag [#allocation4], %s522
        %s524 = sand.u32 %s304, 1
        %s525 = smul.addr %s524, 8
        %s526 = scalar_lea.vmem [#allocation13], %s525
        %v527 = vld [vmem:[%s456] sm:$0xff]
        %v528 = vld [vmem:[%s465] sm:$0xff]
        %v529 = vld [vmem:[%s465 + $0x8] sm:$0xff]
        %v530 = vld [vmem:[#allocation7] sm:$0xff]
        %v531 = vld [vmem:[#allocation7 + $0x8] sm:$0xff]
        %v532 = vld [vmem:[#allocation7 + $0x10] sm:$0xff]
        %v533 = vld [vmem:[#allocation7 + $0x18] sm:$0xff]
        %v534 = vld [vmem:[%s3] sm:$0x1]
        %v536 = vlaneseq
        %v537 = vshrl.u32 %v536, 7
        %v538 = vsub.s32 0, %v537
        %v539 = vrot.slane %v534, %v538
        %vm541 = vcmask 261120
        %v543 = vsel %vm541, %v527, 0
        %545 = vmatprep.subr.mxu0 0.0
        %546 = vmatpush1.msra.mxu0 %v530
        %547 = vmatprep.subr.mxu0 0.0
        %548 = vmatpush1.msra.mxu0 %v531
        %549 = vmatprep.subr.mxu0 0.0
        %550 = vmatpush1.msra.mxu0 %v532
        %551 = vmatprep.subr.mxu0 0.0
        %552 = vmatpush1.msra.mxu0 %v533
        %553 = vmatprep.subr.mxu0 0.0
        %554 = vmatpush1.msra.mxu0 0.0
        %555 = vmatprep.subr.mxu0 0.0
        %556 = vmatpush1.msra.mxu0 0.0
        %557 = vmatprep.subr.mxu0 0.0
        %558 = vmatpush1.msra.mxu0 0.0
        %559 = vmatprep.subr.mxu0 0.0
        %560 = vmatpush1.msra.mxu0 0.0
        %561 = vmatprep.subr.mxu0 0.0
        %562 = vmatpush1.msra.mxu0 0.0
        %563 = vmatprep.subr.mxu0 0.0
        %564 = vmatpush1.msra.mxu0 0.0
        %565 = vmatprep.subr.mxu0 0.0
        %566 = vmatpush1.msra.mxu0 0.0
        %567 = vmatprep.subr.mxu0 0.0
        %568 = vmatpush1.msra.mxu0 0.0
        %569 = vmatprep.subr.mxu0 0.0
        %570 = vmatpush1.msra.mxu0 0.0
        %571 = vmatprep.subr.mxu0 0.0
        %572 = vmatpush1.msra.mxu0 0.0
        %573 = vmatprep.subr.mxu0 0.0
        %574 = vmatpush1.msra.mxu0 0.0
        %575 = vmatprep.subr.mxu0 0.0
        %576 = vmatpush1.msra.mxu0 0.0
        %577 = vmatprep.subr.mxu0 0.0
        %578 = vmatpush1.msra.mxu0 0.0
        %579 = vmatprep.subr.mxu0 0.0
        %580 = vmatpush1.msra.mxu0 0.0
        %581 = vmatprep.subr.mxu0 0.0
        %582 = vmatpush1.msra.mxu0 0.0
        %583 = vmatprep.subr.mxu0 0.0
        %584 = vmatpush1.msra.mxu0 0.0
        %585 = vmatprep.subr.mxu0 0.0
        %586 = vmatpush1.msra.mxu0 0.0
        %587 = vmatprep.subr.mxu0 0.0
        %588 = vmatpush1.msra.mxu0 0.0
        %589 = vmatprep.subr.mxu0 0.0
        %590 = vmatpush1.msra.mxu0 0.0
        %591 = vmatprep.subr.mxu0 0.0
        %592 = vmatpush1.msra.mxu0 0.0
        %593 = vmatprep.subr.mxu0 0.0
        %594 = vmatpush1.msra.mxu0 0.0
        %595 = vmatprep.subr.mxu0 0.0
        %596 = vmatpush1.msra.mxu0 0.0
        %597 = vmatprep.subr.mxu0 0.0
        %598 = vmatpush1.msra.mxu0 0.0
        %599 = vmatprep.subr.mxu0 0.0
        %600 = vmatpush1.msra.mxu0 0.0
        %601 = vmatprep.subr.mxu0 0.0
        %602 = vmatpush1.msra.mxu0 0.0
        %603 = vmatprep.subr.mxu0 0.0
        %604 = vmatpush1.msra.mxu0 0.0
        %605 = vmatprep.subr.mxu0 0.0
        %606 = vmatpush1.msra.mxu0 0.0
        %607 = vmatprep.subr.mxu0 0.0
        %608 = vmatpush1.msra.mxu0 0.0
        %609 = vmatprep.mubr.f32.mxu0 0.0
        %610 = vmatmul.mubr.f32.gmra.mrb[0].mxu0 %v543
        %v611 = vpop.f32.mrb[0].mxu0
        %v612 = vadd.f32 %v539, %v611
        %v613 = vpop.f32.mrb[0].mxu0
        %614 = vdwg.mxu0
        %v615 = vld [vmem:[#allocation8] sm:$0xff]
        %v616 = vld [vmem:[#allocation8 + $0x8] sm:$0xff]
        %v617 = vld [vmem:[#allocation8 + $0x10] sm:$0xff]
        %v618 = vld [vmem:[#allocation8 + $0x18] sm:$0xff]
        %v619 = vld [vmem:[%s5] sm:$0x1]
        %v621 = vlaneseq
        %v622 = vshrl.u32 %v621, 7
        %v623 = vsub.s32 0, %v622
        %v624 = vrot.slane %v619, %v623
        %v627 = vsel %vm541, %v528, 0
        %v630 = vsel %vm541, %v529, 0
        %632 = vmatprep.subr.mxu0 0.0
        %633 = vmatpush1.msra.mxu0 %v615
        %634 = vmatprep.subr.mxu0 0.0
        %635 = vmatpush1.msra.mxu0 %v616
        %636 = vmatprep.subr.mxu0 0.0
        %637 = vmatpush1.msra.mxu0 %v617
        %638 = vmatprep.subr.mxu0 0.0
        %639 = vmatpush1.msra.mxu0 %v618
        %640 = vmatprep.subr.mxu0 0.0
        %641 = vmatpush1.msra.mxu0 0.0
        %642 = vmatprep.subr.mxu0 0.0
        %643 = vmatpush1.msra.mxu0 0.0
        %644 = vmatprep.subr.mxu0 0.0
        %645 = vmatpush1.msra.mxu0 0.0
        %646 = vmatprep.subr.mxu0 0.0
        %647 = vmatpush1.msra.mxu0 0.0
        %648 = vmatprep.subr.mxu0 0.0
        %649 = vmatpush1.msra.mxu0 0.0
        %650 = vmatprep.subr.mxu0 0.0
        %651 = vmatpush1.msra.mxu0 0.0
        %652 = vmatprep.subr.mxu0 0.0
        %653 = vmatpush1.msra.mxu0 0.0
        %654 = vmatprep.subr.mxu0 0.0
        %655 = vmatpush1.msra.mxu0 0.0
        %656 = vmatprep.subr.mxu0 0.0
        %657 = vmatpush1.msra.mxu0 0.0
        %658 = vmatprep.subr.mxu0 0.0
        %659 = vmatpush1.msra.mxu0 0.0
        %660 = vmatprep.subr.mxu0 0.0
        %661 = vmatpush1.msra.mxu0 0.0
        %662 = vmatprep.subr.mxu0 0.0
        %663 = vmatpush1.msra.mxu0 0.0
        %664 = vmatprep.subr.mxu0 0.0
        %665 = vmatpush1.msra.mxu0 0.0
        %666 = vmatprep.subr.mxu0 0.0
        %667 = vmatpush1.msra.mxu0 0.0
        %668 = vmatprep.subr.mxu0 0.0
        %669 = vmatpush1.msra.mxu0 0.0
        %670 = vmatprep.subr.mxu0 0.0
        %671 = vmatpush1.msra.mxu0 0.0
        %672 = vmatprep.subr.mxu0 0.0
        %673 = vmatpush1.msra.mxu0 0.0
        %674 = vmatprep.subr.mxu0 0.0
        %675 = vmatpush1.msra.mxu0 0.0
        %676 = vmatprep.subr.mxu0 0.0
        %677 = vmatpush1.msra.mxu0 0.0
        %678 = vmatprep.subr.mxu0 0.0
        %679 = vmatpush1.msra.mxu0 0.0
        %680 = vmatprep.subr.mxu0 0.0
        %681 = vmatpush1.msra.mxu0 0.0
        %682 = vmatprep.subr.mxu0 0.0
        %683 = vmatpush1.msra.mxu0 0.0
        %684 = vmatprep.subr.mxu0 0.0
        %685 = vmatpush1.msra.mxu0 0.0
        %686 = vmatprep.subr.mxu0 0.0
        %687 = vmatpush1.msra.mxu0 0.0
        %688 = vmatprep.subr.mxu0 0.0
        %689 = vmatpush1.msra.mxu0 0.0
        %690 = vmatprep.subr.mxu0 0.0
        %691 = vmatpush1.msra.mxu0 0.0
        %692 = vmatprep.subr.mxu0 0.0
        %693 = vmatpush1.msra.mxu0 0.0
        %694 = vmatprep.subr.mxu0 0.0
        %695 = vmatpush1.msra.mxu0 0.0
        %696 = vmatprep.mubr.f32.mxu0 0.0
        %697 = vmatmul.mubr.f32.gmra.mrb[0].mxu0 %v627
        %v698 = vpop.f32.mrb[0].mxu0
        %v699 = vadd.f32 %v624, %v698
        %v700 = vpop.f32.mrb[0].mxu0
        %701 = vmatprep.mubr.f32.mxu0 0.0
        %702 = vmatmul.mubr.f32.gmra.mrb[0].mxu0 %v630
        %v703 = vpop.f32.mrb[0].mxu0
        %v704 = vadd.f32 %v624, %v703
        %v705 = vpop.f32.mrb[0].mxu0
        %706 = vdwg.mxu0
        %v707 = vld [vmem:[#allocation10] sm:$0xff]
        %v708 = vld [vmem:[#allocation10 + $0x8] sm:$0xff]
        %v709 = vld [vmem:[#allocation10 + $0x10] sm:$0xff]
        %v710 = vld [vmem:[#allocation10 + $0x18] sm:$0xff]
        %v711 = vld [vmem:[%s7] sm:$0x1]
        %v713 = vlaneseq
        %v714 = vshrl.u32 %v713, 7
        %v715 = vsub.s32 0, %v714
        %v716 = vrot.slane %v711, %v715
        %718 = vmatprep.subr.mxu0 0.0
        %719 = vmatpush1.msra.mxu0 %v707
        %720 = vmatprep.subr.mxu0 0.0
        %721 = vmatpush1.msra.mxu0 %v708
        %722 = vmatprep.subr.mxu0 0.0
        %723 = vmatpush1.msra.mxu0 %v709
        %724 = vmatprep.subr.mxu0 0.0
        %725 = vmatpush1.msra.mxu0 %v710
        %726 = vmatprep.subr.mxu0 0.0
        %727 = vmatpush1.msra.mxu0 0.0
        %728 = vmatprep.subr.mxu0 0.0
        %729 = vmatpush1.msra.mxu0 0.0
        %730 = vmatprep.subr.mxu0 0.0
        %731 = vmatpush1.msra.mxu0 0.0
        %732 = vmatprep.subr.mxu0 0.0
        %733 = vmatpush1.msra.mxu0 0.0
        %734 = vmatprep.subr.mxu0 0.0
        %735 = vmatpush1.msra.mxu0 0.0
        %736 = vmatprep.subr.mxu0 0.0
        %737 = vmatpush1.msra.mxu0 0.0
        %738 = vmatprep.subr.mxu0 0.0
        %739 = vmatpush1.msra.mxu0 0.0
        %740 = vmatprep.subr.mxu0 0.0
        %741 = vmatpush1.msra.mxu0 0.0
        %742 = vmatprep.subr.mxu0 0.0
        %743 = vmatpush1.msra.mxu0 0.0
        %744 = vmatprep.subr.mxu0 0.0
        %745 = vmatpush1.msra.mxu0 0.0
        %746 = vmatprep.subr.mxu0 0.0
        %747 = vmatpush1.msra.mxu0 0.0
        %748 = vmatprep.subr.mxu0 0.0
        %749 = vmatpush1.msra.mxu0 0.0
        %750 = vmatprep.subr.mxu0 0.0
        %751 = vmatpush1.msra.mxu0 0.0
        %752 = vmatprep.subr.mxu0 0.0
        %753 = vmatpush1.msra.mxu0 0.0
        %754 = vmatprep.subr.mxu0 0.0
        %755 = vmatpush1.msra.mxu0 0.0
        %756 = vmatprep.subr.mxu0 0.0
        %757 = vmatpush1.msra.mxu0 0.0
        %758 = vmatprep.subr.mxu0 0.0
        %759 = vmatpush1.msra.mxu0 0.0
        %760 = vmatprep.subr.mxu0 0.0
        %761 = vmatpush1.msra.mxu0 0.0
        %762 = vmatprep.subr.mxu0 0.0
        %763 = vmatpush1.msra.mxu0 0.0
        %764 = vmatprep.subr.mxu0 0.0
        %765 = vmatpush1.msra.mxu0 0.0
        %766 = vmatprep.subr.mxu0 0.0
        %767 = vmatpush1.msra.mxu0 0.0
        %768 = vmatprep.subr.mxu0 0.0
        %769 = vmatpush1.msra.mxu0 0.0
        %770 = vmatprep.subr.mxu0 0.0
        %771 = vmatpush1.msra.mxu0 0.0
        %772 = vmatprep.subr.mxu0 0.0
        %773 = vmatpush1.msra.mxu0 0.0
        %774 = vmatprep.subr.mxu0 0.0
        %775 = vmatpush1.msra.mxu0 0.0
        %776 = vmatprep.subr.mxu0 0.0
        %777 = vmatpush1.msra.mxu0 0.0
        %778 = vmatprep.subr.mxu0 0.0
        %779 = vmatpush1.msra.mxu0 0.0
        %780 = vmatprep.subr.mxu0 0.0
        %781 = vmatpush1.msra.mxu0 0.0
        %782 = vmatprep.mubr.f32.mxu0 0.0
        %783 = vmatmul.mubr.f32.gmra.mrb[0].mxu0 %v627
        %v784 = vpop.f32.mrb[0].mxu0
        %v785 = vadd.f32 %v716, %v784
        %v786 = vpop.f32.mrb[0].mxu0
        %787 = vmatprep.mubr.f32.mxu0 0.0
        %788 = vmatmul.mubr.f32.gmra.mrb[0].mxu0 %v630
        %v789 = vpop.f32.mrb[0].mxu0
        %v790 = vadd.f32 %v716, %v789
        %v791 = vpop.f32.mrb[0].mxu0
        %792 = vdwg.mxu0
        %v793 = vld [vmem:[#allocation11] sm:$0xff]
        %v794 = vld [vmem:[#allocation11 + $0x8] sm:$0xff]
        %v795 = vld [vmem:[#allocation11 + $0x10] sm:$0xff]
        %v796 = vld [vmem:[#allocation11 + $0x18] sm:$0xff]
        %v797 = vld [vmem:[%s9] sm:$0x1]
        %vm798 = vcmask 64512
        %v800 = vsel %vm798, %v612, 0
        %v803 = vsel %vm798, %v699, 0
        %v806 = vsel %vm798, %v704, 0
        %808 = vmatprep.subr.mxu0 0.0
        %809 = vmatpush1.xpose.msra.mxu0 %v803
        %810 = vmatprep.subr.mxu0 0.0
        %811 = vmatpush1.xpose.msra.mxu0 %v806
        %812 = vmatprep.subr.mxu0 0.0
        %813 = vmatpush1.xpose.msra.mxu0 0.0
        %814 = vmatprep.subr.mxu0 0.0
        %815 = vmatpush1.xpose.msra.mxu0 0.0
        %816 = vmatprep.subr.mxu0 0.0
        %817 = vmatpush1.xpose.msra.mxu0 0.0
        %818 = vmatprep.subr.mxu0 0.0
        %819 = vmatpush1.xpose.msra.mxu0 0.0
        %820 = vmatprep.subr.mxu0 0.0
        %821 = vmatpush1.xpose.msra.mxu0 0.0
        %822 = vmatprep.subr.mxu0 0.0
        %823 = vmatpush1.xpose.msra.mxu0 0.0
        %824 = vmatprep.subr.mxu0 0.0
        %825 = vmatpush1.xpose.msra.mxu0 0.0
        %826 = vmatprep.subr.mxu0 0.0
        %827 = vmatpush1.xpose.msra.mxu0 0.0
        %828 = vmatprep.subr.mxu0 0.0
        %829 = vmatpush1.xpose.msra.mxu0 0.0
        %830 = vmatprep.subr.mxu0 0.0
        %831 = vmatpush1.xpose.msra.mxu0 0.0
        %832 = vmatprep.subr.mxu0 0.0
        %833 = vmatpush1.xpose.msra.mxu0 0.0
        %834 = vmatprep.subr.mxu0 0.0
        %835 = vmatpush1.xpose.msra.mxu0 0.0
        %836 = vmatprep.subr.mxu0 0.0
        %837 = vmatpush1.xpose.msra.mxu0 0.0
        %838 = vmatprep.subr.mxu0 0.0
        %839 = vmatpush1.xpose.msra.mxu0 0.0
        %840 = vmatprep.subr.mxu0 0.0
        %841 = vmatpush1.xpose.msra.mxu0 0.0
        %842 = vmatprep.subr.mxu0 0.0
        %843 = vmatpush1.xpose.msra.mxu0 0.0
        %844 = vmatprep.subr.mxu0 0.0
        %845 = vmatpush1.xpose.msra.mxu0 0.0
        %846 = vmatprep.subr.mxu0 0.0
        %847 = vmatpush1.xpose.msra.mxu0 0.0
        %848 = vmatprep.subr.mxu0 0.0
        %849 = vmatpush1.xpose.msra.mxu0 0.0
        %850 = vmatprep.subr.mxu0 0.0
        %851 = vmatpush1.xpose.msra.mxu0 0.0
        %852 = vmatprep.subr.mxu0 0.0
        %853 = vmatpush1.xpose.msra.mxu0 0.0
        %854 = vmatprep.subr.mxu0 0.0
        %855 = vmatpush1.xpose.msra.mxu0 0.0
        %856 = vmatprep.subr.mxu0 0.0
        %857 = vmatpush1.xpose.msra.mxu0 0.0
        %858 = vmatprep.subr.mxu0 0.0
        %859 = vmatpush1.xpose.msra.mxu0 0.0
        %860 = vmatprep.subr.mxu0 0.0
        %861 = vmatpush1.xpose.msra.mxu0 0.0
        %862 = vmatprep.subr.mxu0 0.0
        %863 = vmatpush1.xpose.msra.mxu0 0.0
        %864 = vmatprep.subr.mxu0 0.0
        %865 = vmatpush1.xpose.msra.mxu0 0.0
        %866 = vmatprep.subr.mxu0 0.0
        %867 = vmatpush1.xpose.msra.mxu0 0.0
        %868 = vmatprep.subr.mxu0 0.0
        %869 = vmatpush1.xpose.msra.mxu0 0.0
        %870 = vmatprep.subr.mxu0 0.0
        %871 = vmatpush1.xpose.msra.mxu0 0.0
        %872 = vmatprep.mubr.f32.mxu0 0.0
        %873 = vmatmul.mubr.f32.gmra.mrb[0].mxu0 %v800
        %v874 = vpop.f32.mrb[0].mxu0
        %v875 = vadd.f32 0.0, %v874
        %v876 = vpop.f32.mrb[0].mxu0
        %877 = vdwg.mxu0
        %v878 = vmul.f32 %v875, 0.35355338
        %vm879 = vcmask 130048
        %v880 = vsel %vm879, %v878, -inf
        %881 = vmax.xlane.f32.xlu0 %v880
        %v882 = vpop.xlane.xlu0 %881
        %v883 = vsub.f32 %v878, %v882
        %v884 = vmul.f32 %v883, 1.442695
        %v885 = vpow.pop %v884
        %v886 = vsel %vm879, %v885, 0.0
        %887 = vadd.xlane.f32.xlu0 %v886
        %v888 = vpop.xlane.xlu0 %887
        %v889 = vrcp.pop %v888
        %v890 = vmul.f32 %v885, %v889
        %v892 = vsel %vm879, %v890, 0
        %894 = vmatprep.subr.mxu0 0.0
        %895 = vmatpush1.msra.mxu0 %v785
        %896 = vmatprep.subr.mxu0 0.0
        %897 = vmatpush1.msra.mxu0 %v790
        %898 = vmatprep.subr.mxu0 0.0
        %899 = vmatpush1.msra.mxu0 0.0
        %900 = vmatprep.subr.mxu0 0.0
        %901 = vmatpush1.msra.mxu0 0.0
        %902 = vmatprep.subr.mxu0 0.0
        %903 = vmatpush1.msra.mxu0 0.0
        %904 = vmatprep.subr.mxu0 0.0
        %905 = vmatpush1.msra.mxu0 0.0
        %906 = vmatprep.subr.mxu0 0.0
        %907 = vmatpush1.msra.mxu0 0.0
        %908 = vmatprep.subr.mxu0 0.0
        %909 = vmatpush1.msra.mxu0 0.0
        %910 = vmatprep.subr.mxu0 0.0
        %911 = vmatpush1.msra.mxu0 0.0
        %912 = vmatprep.subr.mxu0 0.0
        %913 = vmatpush1.msra.mxu0 0.0
        %914 = vmatprep.subr.mxu0 0.0
        %915 = vmatpush1.msra.mxu0 0.0
        %916 = vmatprep.subr.mxu0 0.0
        %917 = vmatpush1.msra.mxu0 0.0
        %918 = vmatprep.subr.mxu0 0.0
        %919 = vmatpush1.msra.mxu0 0.0
        %920 = vmatprep.subr.mxu0 0.0
        %921 = vmatpush1.msra.mxu0 0.0
        %922 = vmatprep.subr.mxu0 0.0
        %923 = vmatpush1.msra.mxu0 0.0
        %924 = vmatprep.subr.mxu0 0.0
        %925 = vmatpush1.msra.mxu0 0.0
        %926 = vmatprep.subr.mxu0 0.0
        %927 = vmatpush1.msra.mxu0 0.0
        %928 = vmatprep.subr.mxu0 0.0
        %929 = vmatpush1.msra.mxu0 0.0
        %930 = vmatprep.subr.mxu0 0.0
        %931 = vmatpush1.msra.mxu0 0.0
        %932 = vmatprep.subr.mxu0 0.0
        %933 = vmatpush1.msra.mxu0 0.0
        %934 = vmatprep.subr.mxu0 0.0
        %935 = vmatpush1.msra.mxu0 0.0
        %936 = vmatprep.subr.mxu0 0.0
        %937 = vmatpush1.msra.mxu0 0.0
        %938 = vmatprep.subr.mxu0 0.0
        %939 = vmatpush1.msra.mxu0 0.0
        %940 = vmatprep.subr.mxu0 0.0
        %941 = vmatpush1.msra.mxu0 0.0
        %942 = vmatprep.subr.mxu0 0.0
        %943 = vmatpush1.msra.mxu0 0.0
        %944 = vmatprep.subr.mxu0 0.0
        %945 = vmatpush1.msra.mxu0 0.0
        %946 = vmatprep.subr.mxu0 0.0
        %947 = vmatpush1.msra.mxu0 0.0
        %948 = vmatprep.subr.mxu0 0.0
        %949 = vmatpush1.msra.mxu0 0.0
        %950 = vmatprep.subr.mxu0 0.0
        %951 = vmatpush1.msra.mxu0 0.0
        %952 = vmatprep.subr.mxu0 0.0
        %953 = vmatpush1.msra.mxu0 0.0
        %954 = vmatprep.subr.mxu0 0.0
        %955 = vmatpush1.msra.mxu0 0.0
        %956 = vmatprep.subr.mxu0 0.0
        %957 = vmatpush1.msra.mxu0 0.0
        %958 = vmatprep.mubr.f32.mxu0 0.0
        %959 = vmatmul.mubr.f32.gmra.mrb[0].mxu0 %v892
        %v960 = vpop.f32.mrb[0].mxu0
        %v961 = vadd.f32 0.0, %v960
        %v962 = vpop.f32.mrb[0].mxu0
        %963 = vdwg.mxu0
        %v965 = vsel %vm798, %v961, 0
        %967 = vmatprep.subr.mxu0 0.0
        %968 = vmatpush1.msra.mxu0 %v793
        %969 = vmatprep.subr.mxu0 0.0
        %970 = vmatpush1.msra.mxu0 0.0
        %971 = vmatprep.subr.mxu0 0.0
        %972 = vmatpush1.msra.mxu0 0.0
        %973 = vmatprep.subr.mxu0 0.0
        %974 = vmatpush1.msra.mxu0 0.0
        %975 = vmatprep.subr.mxu0 0.0
        %976 = vmatpush1.msra.mxu0 0.0
        %977 = vmatprep.subr.mxu0 0.0
        %978 = vmatpush1.msra.mxu0 0.0
        %979 = vmatprep.subr.mxu0 0.0
        %980 = vmatpush1.msra.mxu0 0.0
        %981 = vmatprep.subr.mxu0 0.0
        %982 = vmatpush1.msra.mxu0 0.0
        %983 = vmatprep.subr.mxu0 0.0
        %984 = vmatpush1.msra.mxu0 0.0
        %985 = vmatprep.subr.mxu0 0.0
        %986 = vmatpush1.msra.mxu0 0.0
        %987 = vmatprep.subr.mxu0 0.0
        %988 = vmatpush1.msra.mxu0 0.0
        %989 = vmatprep.subr.mxu0 0.0
        %990 = vmatpush1.msra.mxu0 0.0
        %991 = vmatprep.subr.mxu0 0.0
        %992 = vmatpush1.msra.mxu0 0.0
        %993 = vmatprep.subr.mxu0 0.0
        %994 = vmatpush1.msra.mxu0 0.0
        %995 = vmatprep.subr.mxu0 0.0
        %996 = vmatpush1.msra.mxu0 0.0
        %997 = vmatprep.subr.mxu0 0.0
        %998 = vmatpush1.msra.mxu0 0.0
        %999 = vmatprep.subr.mxu0 0.0
        %1000 = vmatpush1.msra.mxu0 0.0
        %1001 = vmatprep.subr.mxu0 0.0
        %1002 = vmatpush1.msra.mxu0 0.0
        %1003 = vmatprep.subr.mxu0 0.0
        %1004 = vmatpush1.msra.mxu0 0.0
        %1005 = vmatprep.subr.mxu0 0.0
        %1006 = vmatpush1.msra.mxu0 0.0
        %1007 = vmatprep.subr.mxu0 0.0
        %1008 = vmatpush1.msra.mxu0 0.0
        %1009 = vmatprep.subr.mxu0 0.0
        %1010 = vmatpush1.msra.mxu0 0.0
        %1011 = vmatprep.subr.mxu0 0.0
        %1012 = vmatpush1.msra.mxu0 0.0
        %1013 = vmatprep.subr.mxu0 0.0
        %1014 = vmatpush1.msra.mxu0 0.0
        %1015 = vmatprep.subr.mxu0 0.0
        %1016 = vmatpush1.msra.mxu0 0.0
        %1017 = vmatprep.subr.mxu0 0.0
        %1018 = vmatpush1.msra.mxu0 0.0
        %1019 = vmatprep.subr.mxu0 0.0
        %1020 = vmatpush1.msra.mxu0 0.0
        %1021 = vmatprep.subr.mxu0 0.0
        %1022 = vmatpush1.msra.mxu0 0.0
        %1023 = vmatprep.subr.mxu0 0.0
        %1024 = vmatpush1.msra.mxu0 0.0
        %1025 = vmatprep.subr.mxu0 0.0
        %1026 = vmatpush1.msra.mxu0 0.0
        %1027 = vmatprep.subr.mxu0 0.0
        %1028 = vmatpush1.msra.mxu0 0.0
        %1029 = vmatprep.subr.mxu0 0.0
        %1030 = vmatpush1.msra.mxu0 0.0
        %1031 = vmatprep.mubr.f32.mxu0 0.0
        %1032 = vmatmul.mubr.f32.gmra.mrb[0].mxu0 %v965
        %v1033 = vpop.f32.mrb[0].mxu0
        %v1034 = vadd.f32 0.0, %v1033
        %v1035 = vpop.f32.mrb[0].mxu0
        %1036 = vdwg.mxu0
        %v1038 = vlaneseq
        %v1039 = vshrl.u32 %v1038, 7
        %v1040 = vsub.s32 0, %v1039
        %v1041 = vrot.slane %v797, %v1040
        %v1043 = vadd.f32 %v1041, %v1034
        %1044 = vrot.lane.b32.xlu0 %v612, 120
        %v1045 = vpop.permute.xlu0 %1044
        %1046 = vrot.lane.b32.xlu0 %v699, 120
        %v1047 = vpop.permute.xlu0 %1046
        %1048 = vrot.lane.b32.xlu0 %v704, 120
        %v1049 = vpop.permute.xlu0 %1048
        %v1050 = vsel %vm798, %v1045, 0
        %v1052 = vsel %vm798, %v1047, 0
        %v1054 = vsel %vm798, %v1049, 0
        %1056 = vmatprep.subr.mxu0 0.0
        %1057 = vmatpush1.xpose.msra.mxu0 %v1052
        %1058 = vmatprep.subr.mxu0 0.0
        %1059 = vmatpush1.xpose.msra.mxu0 %v1054
        %1060 = vmatprep.subr.mxu0 0.0
        %1061 = vmatpush1.xpose.msra.mxu0 0.0
        %1062 = vmatprep.subr.mxu0 0.0
        %1063 = vmatpush1.xpose.msra.mxu0 0.0
        %1064 = vmatprep.subr.mxu0 0.0
        %1065 = vmatpush1.xpose.msra.mxu0 0.0
        %1066 = vmatprep.subr.mxu0 0.0
        %1067 = vmatpush1.xpose.msra.mxu0 0.0
        %1068 = vmatprep.subr.mxu0 0.0
        %1069 = vmatpush1.xpose.msra.mxu0 0.0
        %1070 = vmatprep.subr.mxu0 0.0
        %1071 = vmatpush1.xpose.msra.mxu0 0.0
        %1072 = vmatprep.subr.mxu0 0.0
        %1073 = vmatpush1.xpose.msra.mxu0 0.0
        %1074 = vmatprep.subr.mxu0 0.0
        %1075 = vmatpush1.xpose.msra.mxu0 0.0
        %1076 = vmatprep.subr.mxu0 0.0
        %1077 = vmatpush1.xpose.msra.mxu0 0.0
        %1078 = vmatprep.subr.mxu0 0.0
        %1079 = vmatpush1.xpose.msra.mxu0 0.0
        %1080 = vmatprep.subr.mxu0 0.0
        %1081 = vmatpush1.xpose.msra.mxu0 0.0
        %1082 = vmatprep.subr.mxu0 0.0
        %1083 = vmatpush1.xpose.msra.mxu0 0.0
        %1084 = vmatprep.subr.mxu0 0.0
        %1085 = vmatpush1.xpose.msra.mxu0 0.0
        %1086 = vmatprep.subr.mxu0 0.0
        %1087 = vmatpush1.xpose.msra.mxu0 0.0
        %1088 = vmatprep.subr.mxu0 0.0
        %1089 = vmatpush1.xpose.msra.mxu0 0.0
        %1090 = vmatprep.subr.mxu0 0.0
        %1091 = vmatpush1.xpose.msra.mxu0 0.0
        %1092 = vmatprep.subr.mxu0 0.0
        %1093 = vmatpush1.xpose.msra.mxu0 0.0
        %1094 = vmatprep.subr.mxu0 0.0
        %1095 = vmatpush1.xpose.msra.mxu0 0.0
        %1096 = vmatprep.subr.mxu0 0.0
        %1097 = vmatpush1.xpose.msra.mxu0 0.0
        %1098 = vmatprep.subr.mxu0 0.0
        %1099 = vmatpush1.xpose.msra.mxu0 0.0
        %1100 = vmatprep.subr.mxu0 0.0
        %1101 = vmatpush1.xpose.msra.mxu0 0.0
        %1102 = vmatprep.subr.mxu0 0.0
        %1103 = vmatpush1.xpose.msra.mxu0 0.0
        %1104 = vmatprep.subr.mxu0 0.0
        %1105 = vmatpush1.xpose.msra.mxu0 0.0
        %1106 = vmatprep.subr.mxu0 0.0
        %1107 = vmatpush1.xpose.msra.mxu0 0.0
        %1108 = vmatprep.subr.mxu0 0.0
        %1109 = vmatpush1.xpose.msra.mxu0 0.0
        %1110 = vmatprep.subr.mxu0 0.0
        %1111 = vmatpush1.xpose.msra.mxu0 0.0
        %1112 = vmatprep.subr.mxu0 0.0
        %1113 = vmatpush1.xpose.msra.mxu0 0.0
        %1114 = vmatprep.subr.mxu0 0.0
        %1115 = vmatpush1.xpose.msra.mxu0 0.0
        %1116 = vmatprep.subr.mxu0 0.0
        %1117 = vmatpush1.xpose.msra.mxu0 0.0
        %1118 = vmatprep.subr.mxu0 0.0
        %1119 = vmatpush1.xpose.msra.mxu0 0.0
        %1120 = vmatprep.mubr.f32.mxu0 0.0
        %1121 = vmatmul.mubr.f32.gmra.mrb[0].mxu0 %v1050
        %v1122 = vpop.f32.mrb[0].mxu0
        %v1123 = vadd.f32 0.0, %v1122
        %v1124 = vpop.f32.mrb[0].mxu0
        %1125 = vdwg.mxu0
        %v1126 = vmul.f32 %v1123, 0.35355338
        %v1127 = vsel %vm879, %v1126, -inf
        %1128 = vmax.xlane.f32.xlu0 %v1127
        %v1129 = vpop.xlane.xlu0 %1128
        %v1130 = vsub.f32 %v1126, %v1129
        %v1131 = vmul.f32 %v1130, 1.442695
        %v1132 = vpow.pop %v1131
        %v1133 = vsel %vm879, %v1132, 0.0
        %1134 = vadd.xlane.f32.xlu0 %v1133
        %v1135 = vpop.xlane.xlu0 %1134
        %v1136 = vrcp.pop %v1135
        %v1137 = vmul.f32 %v1132, %v1136
        %1140 = vrot.lane.b32.xlu0 %v785, 120
        %v1141 = vpop.permute.xlu0 %1140
        %1142 = vrot.lane.b32.xlu0 %v790, 120
        %v1143 = vpop.permute.xlu0 %1142
        %v1147 = vsel %vm879, %v1137, 0
        %1149 = vmatprep.subr.mxu0 0.0
        %1150 = vmatpush1.msra.mxu0 %v1141
        %1151 = vmatprep.subr.mxu0 0.0
        %1152 = vmatpush1.msra.mxu0 %v1143
        %1153 = vmatprep.subr.mxu0 0.0
        %1154 = vmatpush1.msra.mxu0 0.0
        %1155 = vmatprep.subr.mxu0 0.0
        %1156 = vmatpush1.msra.mxu0 0.0
        %1157 = vmatprep.subr.mxu0 0.0
        %1158 = vmatpush1.msra.mxu0 0.0
        %1159 = vmatprep.subr.mxu0 0.0
        %1160 = vmatpush1.msra.mxu0 0.0
        %1161 = vmatprep.subr.mxu0 0.0
        %1162 = vmatpush1.msra.mxu0 0.0
        %1163 = vmatprep.subr.mxu0 0.0
        %1164 = vmatpush1.msra.mxu0 0.0
        %1165 = vmatprep.subr.mxu0 0.0
        %1166 = vmatpush1.msra.mxu0 0.0
        %1167 = vmatprep.subr.mxu0 0.0
        %1168 = vmatpush1.msra.mxu0 0.0
        %1169 = vmatprep.subr.mxu0 0.0
        %1170 = vmatpush1.msra.mxu0 0.0
        %1171 = vmatprep.subr.mxu0 0.0
        %1172 = vmatpush1.msra.mxu0 0.0
        %1173 = vmatprep.subr.mxu0 0.0
        %1174 = vmatpush1.msra.mxu0 0.0
        %1175 = vmatprep.subr.mxu0 0.0
        %1176 = vmatpush1.msra.mxu0 0.0
        %1177 = vmatprep.subr.mxu0 0.0
        %1178 = vmatpush1.msra.mxu0 0.0
        %1179 = vmatprep.subr.mxu0 0.0
        %1180 = vmatpush1.msra.mxu0 0.0
        %1181 = vmatprep.subr.mxu0 0.0
        %1182 = vmatpush1.msra.mxu0 0.0
        %1183 = vmatprep.subr.mxu0 0.0
        %1184 = vmatpush1.msra.mxu0 0.0
        %1185 = vmatprep.subr.mxu0 0.0
        %1186 = vmatpush1.msra.mxu0 0.0
        %1187 = vmatprep.subr.mxu0 0.0
        %1188 = vmatpush1.msra.mxu0 0.0
        %1189 = vmatprep.subr.mxu0 0.0
        %1190 = vmatpush1.msra.mxu0 0.0
        %1191 = vmatprep.subr.mxu0 0.0
        %1192 = vmatpush1.msra.mxu0 0.0
        %1193 = vmatprep.subr.mxu0 0.0
        %1194 = vmatpush1.msra.mxu0 0.0
        %1195 = vmatprep.subr.mxu0 0.0
        %1196 = vmatpush1.msra.mxu0 0.0
        %1197 = vmatprep.subr.mxu0 0.0
        %1198 = vmatpush1.msra.mxu0 0.0
        %1199 = vmatprep.subr.mxu0 0.0
        %1200 = vmatpush1.msra.mxu0 0.0
        %1201 = vmatprep.subr.mxu0 0.0
        %1202 = vmatpush1.msra.mxu0 0.0
        %1203 = vmatprep.subr.mxu0 0.0
        %1204 = vmatpush1.msra.mxu0 0.0
        %1205 = vmatprep.subr.mxu0 0.0
        %1206 = vmatpush1.msra.mxu0 0.0
        %1207 = vmatprep.subr.mxu0 0.0
        %1208 = vmatpush1.msra.mxu0 0.0
        %1209 = vmatprep.subr.mxu0 0.0
        %1210 = vmatpush1.msra.mxu0 0.0
        %1211 = vmatprep.subr.mxu0 0.0
        %1212 = vmatpush1.msra.mxu0 0.0
        %1213 = vmatprep.mubr.f32.mxu0 0.0
        %1214 = vmatmul.mubr.f32.gmra.mrb[0].mxu0 %v1147
        %v1215 = vpop.f32.mrb[0].mxu0
        %v1216 = vadd.f32 0.0, %v1215
        %v1217 = vpop.f32.mrb[0].mxu0
        %1218 = vdwg.mxu0
        %v1220 = vsel %vm798, %v1216, 0
        %1222 = vmatprep.subr.mxu0 0.0
        %1223 = vmatpush1.msra.mxu0 %v794
        %1224 = vmatprep.subr.mxu0 0.0
        %1225 = vmatpush1.msra.mxu0 0.0
        %1226 = vmatprep.subr.mxu0 0.0
        %1227 = vmatpush1.msra.mxu0 0.0
        %1228 = vmatprep.subr.mxu0 0.0
        %1229 = vmatpush1.msra.mxu0 0.0
        %1230 = vmatprep.subr.mxu0 0.0
        %1231 = vmatpush1.msra.mxu0 0.0
        %1232 = vmatprep.subr.mxu0 0.0
        %1233 = vmatpush1.msra.mxu0 0.0
        %1234 = vmatprep.subr.mxu0 0.0
        %1235 = vmatpush1.msra.mxu0 0.0
        %1236 = vmatprep.subr.mxu0 0.0
        %1237 = vmatpush1.msra.mxu0 0.0
        %1238 = vmatprep.subr.mxu0 0.0
        %1239 = vmatpush1.msra.mxu0 0.0
        %1240 = vmatprep.subr.mxu0 0.0
        %1241 = vmatpush1.msra.mxu0 0.0
        %1242 = vmatprep.subr.mxu0 0.0
        %1243 = vmatpush1.msra.mxu0 0.0
        %1244 = vmatprep.subr.mxu0 0.0
        %1245 = vmatpush1.msra.mxu0 0.0
        %1246 = vmatprep.subr.mxu0 0.0
        %1247 = vmatpush1.msra.mxu0 0.0
        %1248 = vmatprep.subr.mxu0 0.0
        %1249 = vmatpush1.msra.mxu0 0.0
        %1250 = vmatprep.subr.mxu0 0.0
        %1251 = vmatpush1.msra.mxu0 0.0
        %1252 = vmatprep.subr.mxu0 0.0
        %1253 = vmatpush1.msra.mxu0 0.0
        %1254 = vmatprep.subr.mxu0 0.0
        %1255 = vmatpush1.msra.mxu0 0.0
        %1256 = vmatprep.subr.mxu0 0.0
        %1257 = vmatpush1.msra.mxu0 0.0
        %1258 = vmatprep.subr.mxu0 0.0
        %1259 = vmatpush1.msra.mxu0 0.0
        %1260 = vmatprep.subr.mxu0 0.0
        %1261 = vmatpush1.msra.mxu0 0.0
        %1262 = vmatprep.subr.mxu0 0.0
        %1263 = vmatpush1.msra.mxu0 0.0
        %1264 = vmatprep.subr.mxu0 0.0
        %1265 = vmatpush1.msra.mxu0 0.0
        %1266 = vmatprep.subr.mxu0 0.0
        %1267 = vmatpush1.msra.mxu0 0.0
        %1268 = vmatprep.subr.mxu0 0.0
        %1269 = vmatpush1.msra.mxu0 0.0
        %1270 = vmatprep.subr.mxu0 0.0
        %1271 = vmatpush1.msra.mxu0 0.0
        %1272 = vmatprep.subr.mxu0 0.0
        %1273 = vmatpush1.msra.mxu0 0.0
        %1274 = vmatprep.subr.mxu0 0.0
        %1275 = vmatpush1.msra.mxu0 0.0
        %1276 = vmatprep.subr.mxu0 0.0
        %1277 = vmatpush1.msra.mxu0 0.0
        %1278 = vmatprep.subr.mxu0 0.0
        %1279 = vmatpush1.msra.mxu0 0.0
        %1280 = vmatprep.subr.mxu0 0.0
        %1281 = vmatpush1.msra.mxu0 0.0
        %1282 = vmatprep.subr.mxu0 0.0
        %1283 = vmatpush1.msra.mxu0 0.0
        %1284 = vmatprep.subr.mxu0 0.0
        %1285 = vmatpush1.msra.mxu0 0.0
        %1286 = vmatprep.mubr.f32.mxu0 0.0
        %1287 = vmatmul.mubr.f32.gmra.mrb[0].mxu0 %v1220
        %v1288 = vpop.f32.mrb[0].mxu0
        %v1289 = vadd.f32 0.0, %v1288
        %v1290 = vpop.f32.mrb[0].mxu0
        %1291 = vdwg.mxu0
        %v1292 = vadd.f32 %v1043, %v1289
        %1293 = vrot.lane.b32.xlu0 %v612, 112
        %v1294 = vpop.permute.xlu0 %1293
        %1295 = vrot.lane.b32.xlu0 %v699, 112
        %v1296 = vpop.permute.xlu0 %1295
        %1297 = vrot.lane.b32.xlu0 %v704, 112
        %v1298 = vpop.permute.xlu0 %1297
        %v1299 = vsel %vm798, %v1294, 0
        %v1301 = vsel %vm798, %v1296, 0
        %v1303 = vsel %vm798, %v1298, 0
        %1305 = vmatprep.subr.mxu0 0.0
        %1306 = vmatpush1.xpose.msra.mxu0 %v1301
        %1307 = vmatprep.subr.mxu0 0.0
        %1308 = vmatpush1.xpose.msra.mxu0 %v1303
        %1309 = vmatprep.subr.mxu0 0.0
        %1310 = vmatpush1.xpose.msra.mxu0 0.0
        %1311 = vmatprep.subr.mxu0 0.0
        %1312 = vmatpush1.xpose.msra.mxu0 0.0
        %1313 = vmatprep.subr.mxu0 0.0
        %1314 = vmatpush1.xpose.msra.mxu0 0.0
        %1315 = vmatprep.subr.mxu0 0.0
        %1316 = vmatpush1.xpose.msra.mxu0 0.0
        %1317 = vmatprep.subr.mxu0 0.0
        %1318 = vmatpush1.xpose.msra.mxu0 0.0
        %1319 = vmatprep.subr.mxu0 0.0
        %1320 = vmatpush1.xpose.msra.mxu0 0.0
        %1321 = vmatprep.subr.mxu0 0.0
        %1322 = vmatpush1.xpose.msra.mxu0 0.0
        %1323 = vmatprep.subr.mxu0 0.0
        %1324 = vmatpush1.xpose.msra.mxu0 0.0
        %1325 = vmatprep.subr.mxu0 0.0
        %1326 = vmatpush1.xpose.msra.mxu0 0.0
        %1327 = vmatprep.subr.mxu0 0.0
        %1328 = vmatpush1.xpose.msra.mxu0 0.0
        %1329 = vmatprep.subr.mxu0 0.0
        %1330 = vmatpush1.xpose.msra.mxu0 0.0
        %1331 = vmatprep.subr.mxu0 0.0
        %1332 = vmatpush1.xpose.msra.mxu0 0.0
        %1333 = vmatprep.subr.mxu0 0.0
        %1334 = vmatpush1.xpose.msra.mxu0 0.0
        %1335 = vmatprep.subr.mxu0 0.0
        %1336 = vmatpush1.xpose.msra.mxu0 0.0
        %1337 = vmatprep.subr.mxu0 0.0
        %1338 = vmatpush1.xpose.msra.mxu0 0.0
        %1339 = vmatprep.subr.mxu0 0.0
        %1340 = vmatpush1.xpose.msra.mxu0 0.0
        %1341 = vmatprep.subr.mxu0 0.0
        %1342 = vmatpush1.xpose.msra.mxu0 0.0
        %1343 = vmatprep.subr.mxu0 0.0
        %1344 = vmatpush1.xpose.msra.mxu0 0.0
        %1345 = vmatprep.subr.mxu0 0.0
        %1346 = vmatpush1.xpose.msra.mxu0 0.0
        %1347 = vmatprep.subr.mxu0 0.0
        %1348 = vmatpush1.xpose.msra.mxu0 0.0
        %1349 = vmatprep.subr.mxu0 0.0
        %1350 = vmatpush1.xpose.msra.mxu0 0.0
        %1351 = vmatprep.subr.mxu0 0.0
        %1352 = vmatpush1.xpose.msra.mxu0 0.0
        %1353 = vmatprep.subr.mxu0 0.0
        %1354 = vmatpush1.xpose.msra.mxu0 0.0
        %1355 = vmatprep.subr.mxu0 0.0
        %1356 = vmatpush1.xpose.msra.mxu0 0.0
        %1357 = vmatprep.subr.mxu0 0.0
        %1358 = vmatpush1.xpose.msra.mxu0 0.0
        %1359 = vmatprep.subr.mxu0 0.0
        %1360 = vmatpush1.xpose.msra.mxu0 0.0
        %1361 = vmatprep.subr.mxu0 0.0
        %1362 = vmatpush1.xpose.msra.mxu0 0.0
        %1363 = vmatprep.subr.mxu0 0.0
        %1364 = vmatpush1.xpose.msra.mxu0 0.0
        %1365 = vmatprep.subr.mxu0 0.0
        %1366 = vmatpush1.xpose.msra.mxu0 0.0
        %1367 = vmatprep.subr.mxu0 0.0
        %1368 = vmatpush1.xpose.msra.mxu0 0.0
        %1369 = vmatprep.mubr.f32.mxu0 0.0
        %1370 = vmatmul.mubr.f32.gmra.mrb[0].mxu0 %v1299
        %v1371 = vpop.f32.mrb[0].mxu0
        %v1372 = vadd.f32 0.0, %v1371
        %v1373 = vpop.f32.mrb[0].mxu0
        %1374 = vdwg.mxu0
        %v1375 = vmul.f32 %v1372, 0.35355338
        %v1376 = vsel %vm879, %v1375, -inf
        %1377 = vmax.xlane.f32.xlu0 %v1376
        %v1378 = vpop.xlane.xlu0 %1377
        %v1379 = vsub.f32 %v1375, %v1378
        %v1380 = vmul.f32 %v1379, 1.442695
        %v1381 = vpow.pop %v1380
        %v1382 = vsel %vm879, %v1381, 0.0
        %1383 = vadd.xlane.f32.xlu0 %v1382
        %v1384 = vpop.xlane.xlu0 %1383
        %v1385 = vrcp.pop %v1384
        %v1386 = vmul.f32 %v1381, %v1385
        %1387 = vrot.lane.b32.xlu0 %v785, 112
        %v1388 = vpop.permute.xlu0 %1387
        %1389 = vrot.lane.b32.xlu0 %v790, 112
        %v1390 = vpop.permute.xlu0 %1389
        %v1394 = vsel %vm879, %v1386, 0
        %1396 = vmatprep.subr.mxu0 0.0
        %1397 = vmatpush1.msra.mxu0 %v1388
        %1398 = vmatprep.subr.mxu0 0.0
        %1399 = vmatpush1.msra.mxu0 %v1390
        %1400 = vmatprep.subr.mxu0 0.0
        %1401 = vmatpush1.msra.mxu0 0.0
        %1402 = vmatprep.subr.mxu0 0.0
        %1403 = vmatpush1.msra.mxu0 0.0
        %1404 = vmatprep.subr.mxu0 0.0
        %1405 = vmatpush1.msra.mxu0 0.0
        %1406 = vmatprep.subr.mxu0 0.0
        %1407 = vmatpush1.msra.mxu0 0.0
        %1408 = vmatprep.subr.mxu0 0.0
        %1409 = vmatpush1.msra.mxu0 0.0
        %1410 = vmatprep.subr.mxu0 0.0
        %1411 = vmatpush1.msra.mxu0 0.0
        %1412 = vmatprep.subr.mxu0 0.0
        %1413 = vmatpush1.msra.mxu0 0.0
        %1414 = vmatprep.subr.mxu0 0.0
        %1415 = vmatpush1.msra.mxu0 0.0
        %1416 = vmatprep.subr.mxu0 0.0
        %1417 = vmatpush1.msra.mxu0 0.0
        %1418 = vmatprep.subr.mxu0 0.0
        %1419 = vmatpush1.msra.mxu0 0.0
        %1420 = vmatprep.subr.mxu0 0.0
        %1421 = vmatpush1.msra.mxu0 0.0
        %1422 = vmatprep.subr.mxu0 0.0
        %1423 = vmatpush1.msra.mxu0 0.0
        %1424 = vmatprep.subr.mxu0 0.0
        %1425 = vmatpush1.msra.mxu0 0.0
        %1426 = vmatprep.subr.mxu0 0.0
        %1427 = vmatpush1.msra.mxu0 0.0
        %1428 = vmatprep.subr.mxu0 0.0
        %1429 = vmatpush1.msra.mxu0 0.0
        %1430 = vmatprep.subr.mxu0 0.0
        %1431 = vmatpush1.msra.mxu0 0.0
        %1432 = vmatprep.subr.mxu0 0.0
        %1433 = vmatpush1.msra.mxu0 0.0
        %1434 = vmatprep.subr.mxu0 0.0
        %1435 = vmatpush1.msra.mxu0 0.0
        %1436 = vmatprep.subr.mxu0 0.0
        %1437 = vmatpush1.msra.mxu0 0.0
        %1438 = vmatprep.subr.mxu0 0.0
        %1439 = vmatpush1.msra.mxu0 0.0
        %1440 = vmatprep.subr.mxu0 0.0
        %1441 = vmatpush1.msra.mxu0 0.0
        %1442 = vmatprep.subr.mxu0 0.0
        %1443 = vmatpush1.msra.mxu0 0.0
        %1444 = vmatprep.subr.mxu0 0.0
        %1445 = vmatpush1.msra.mxu0 0.0
        %1446 = vmatprep.subr.mxu0 0.0
        %1447 = vmatpush1.msra.mxu0 0.0
        %1448 = vmatprep.subr.mxu0 0.0
        %1449 = vmatpush1.msra.mxu0 0.0
        %1450 = vmatprep.subr.mxu0 0.0
        %1451 = vmatpush1.msra.mxu0 0.0
        %1452 = vmatprep.subr.mxu0 0.0
        %1453 = vmatpush1.msra.mxu0 0.0
        %1454 = vmatprep.subr.mxu0 0.0
        %1455 = vmatpush1.msra.mxu0 0.0
        %1456 = vmatprep.subr.mxu0 0.0
        %1457 = vmatpush1.msra.mxu0 0.0
        %1458 = vmatprep.subr.mxu0 0.0
        %1459 = vmatpush1.msra.mxu0 0.0
        %1460 = vmatprep.mubr.f32.mxu0 0.0
        %1461 = vmatmul.mubr.f32.gmra.mrb[0].mxu0 %v1394
        %v1462 = vpop.f32.mrb[0].mxu0
        %v1463 = vadd.f32 0.0, %v1462
        %v1464 = vpop.f32.mrb[0].mxu0
        %1465 = vdwg.mxu0
        %v1467 = vsel %vm798, %v1463, 0
        %1469 = vmatprep.subr.mxu0 0.0
        %1470 = vmatpush1.msra.mxu0 %v795
        %1471 = vmatprep.subr.mxu0 0.0
        %1472 = vmatpush1.msra.mxu0 0.0
        %1473 = vmatprep.subr.mxu0 0.0
        %1474 = vmatpush1.msra.mxu0 0.0
        %1475 = vmatprep.subr.mxu0 0.0
        %1476 = vmatpush1.msra.mxu0 0.0
        %1477 = vmatprep.subr.mxu0 0.0
        %1478 = vmatpush1.msra.mxu0 0.0
        %1479 = vmatprep.subr.mxu0 0.0
        %1480 = vmatpush1.msra.mxu0 0.0
        %1481 = vmatprep.subr.mxu0 0.0
        %1482 = vmatpush1.msra.mxu0 0.0
        %1483 = vmatprep.subr.mxu0 0.0
        %1484 = vmatpush1.msra.mxu0 0.0
        %1485 = vmatprep.subr.mxu0 0.0
        %1486 = vmatpush1.msra.mxu0 0.0
        %1487 = vmatprep.subr.mxu0 0.0
        %1488 = vmatpush1.msra.mxu0 0.0
        %1489 = vmatprep.subr.mxu0 0.0
        %1490 = vmatpush1.msra.mxu0 0.0
        %1491 = vmatprep.subr.mxu0 0.0
        %1492 = vmatpush1.msra.mxu0 0.0
        %1493 = vmatprep.subr.mxu0 0.0
        %1494 = vmatpush1.msra.mxu0 0.0
        %1495 = vmatprep.subr.mxu0 0.0
        %1496 = vmatpush1.msra.mxu0 0.0
        %1497 = vmatprep.subr.mxu0 0.0
        %1498 = vmatpush1.msra.mxu0 0.0
        %1499 = vmatprep.subr.mxu0 0.0
        %1500 = vmatpush1.msra.mxu0 0.0
        %1501 = vmatprep.subr.mxu0 0.0
        %1502 = vmatpush1.msra.mxu0 0.0
        %1503 = vmatprep.subr.mxu0 0.0
        %1504 = vmatpush1.msra.mxu0 0.0
        %1505 = vmatprep.subr.mxu0 0.0
        %1506 = vmatpush1.msra.mxu0 0.0
        %1507 = vmatprep.subr.mxu0 0.0
        %1508 = vmatpush1.msra.mxu0 0.0
        %1509 = vmatprep.subr.mxu0 0.0
        %1510 = vmatpush1.msra.mxu0 0.0
        %1511 = vmatprep.subr.mxu0 0.0
        %1512 = vmatpush1.msra.mxu0 0.0
        %1513 = vmatprep.subr.mxu0 0.0
        %1514 = vmatpush1.msra.mxu0 0.0
        %1515 = vmatprep.subr.mxu0 0.0
        %1516 = vmatpush1.msra.mxu0 0.0
        %1517 = vmatprep.subr.mxu0 0.0
        %1518 = vmatpush1.msra.mxu0 0.0
        %1519 = vmatprep.subr.mxu0 0.0
        %1520 = vmatpush1.msra.mxu0 0.0
        %1521 = vmatprep.subr.mxu0 0.0
        %1522 = vmatpush1.msra.mxu0 0.0
        %1523 = vmatprep.subr.mxu0 0.0
        %1524 = vmatpush1.msra.mxu0 0.0
        %1525 = vmatprep.subr.mxu0 0.0
        %1526 = vmatpush1.msra.mxu0 0.0
        %1527 = vmatprep.subr.mxu0 0.0
        %1528 = vmatpush1.msra.mxu0 0.0
        %1529 = vmatprep.subr.mxu0 0.0
        %1530 = vmatpush1.msra.mxu0 0.0
        %1531 = vmatprep.subr.mxu0 0.0
        %1532 = vmatpush1.msra.mxu0 0.0
        %1533 = vmatprep.mubr.f32.mxu0 0.0
        %1534 = vmatmul.mubr.f32.gmra.mrb[0].mxu0 %v1467
        %v1535 = vpop.f32.mrb[0].mxu0
        %v1536 = vadd.f32 0.0, %v1535
        %v1537 = vpop.f32.mrb[0].mxu0
        %1538 = vdwg.mxu0
        %v1539 = vadd.f32 %v1292, %v1536
        %1540 = vrot.lane.b32.xlu0 %v612, 104
        %v1541 = vpop.permute.xlu0 %1540
        %1542 = vrot.lane.b32.xlu0 %v699, 104
        %v1543 = vpop.permute.xlu0 %1542
        %1544 = vrot.lane.b32.xlu0 %v704, 104
        %v1545 = vpop.permute.xlu0 %1544
        %v1546 = vsel %vm798, %v1541, 0
        %v1548 = vsel %vm798, %v1543, 0
        %v1550 = vsel %vm798, %v1545, 0
        %1552 = vmatprep.subr.mxu0 0.0
        %1553 = vmatpush1.xpose.msra.mxu0 %v1548
        %1554 = vmatprep.subr.mxu0 0.0
        %1555 = vmatpush1.xpose.msra.mxu0 %v1550
        %1556 = vmatprep.subr.mxu0 0.0
        %1557 = vmatpush1.xpose.msra.mxu0 0.0
        %1558 = vmatprep.subr.mxu0 0.0
        %1559 = vmatpush1.xpose.msra.mxu0 0.0
        %1560 = vmatprep.subr.mxu0 0.0
        %1561 = vmatpush1.xpose.msra.mxu0 0.0
        %1562 = vmatprep.subr.mxu0 0.0
        %1563 = vmatpush1.xpose.msra.mxu0 0.0
        %1564 = vmatprep.subr.mxu0 0.0
        %1565 = vmatpush1.xpose.msra.mxu0 0.0
        %1566 = vmatprep.subr.mxu0 0.0
        %1567 = vmatpush1.xpose.msra.mxu0 0.0
        %1568 = vmatprep.subr.mxu0 0.0
        %1569 = vmatpush1.xpose.msra.mxu0 0.0
        %1570 = vmatprep.subr.mxu0 0.0
        %1571 = vmatpush1.xpose.msra.mxu0 0.0
        %1572 = vmatprep.subr.mxu0 0.0
        %1573 = vmatpush1.xpose.msra.mxu0 0.0
        %1574 = vmatprep.subr.mxu0 0.0
        %1575 = vmatpush1.xpose.msra.mxu0 0.0
        %1576 = vmatprep.subr.mxu0 0.0
        %1577 = vmatpush1.xpose.msra.mxu0 0.0
        %1578 = vmatprep.subr.mxu0 0.0
        %1579 = vmatpush1.xpose.msra.mxu0 0.0
        %1580 = vmatprep.subr.mxu0 0.0
        %1581 = vmatpush1.xpose.msra.mxu0 0.0
        %1582 = vmatprep.subr.mxu0 0.0
        %1583 = vmatpush1.xpose.msra.mxu0 0.0
        %1584 = vmatprep.subr.mxu0 0.0
        %1585 = vmatpush1.xpose.msra.mxu0 0.0
        %1586 = vmatprep.subr.mxu0 0.0
        %1587 = vmatpush1.xpose.msra.mxu0 0.0
        %1588 = vmatprep.subr.mxu0 0.0
        %1589 = vmatpush1.xpose.msra.mxu0 0.0
        %1590 = vmatprep.subr.mxu0 0.0
        %1591 = vmatpush1.xpose.msra.mxu0 0.0
        %1592 = vmatprep.subr.mxu0 0.0
        %1593 = vmatpush1.xpose.msra.mxu0 0.0
        %1594 = vmatprep.subr.mxu0 0.0
        %1595 = vmatpush1.xpose.msra.mxu0 0.0
        %1596 = vmatprep.subr.mxu0 0.0
        %1597 = vmatpush1.xpose.msra.mxu0 0.0
        %1598 = vmatprep.subr.mxu0 0.0
        %1599 = vmatpush1.xpose.msra.mxu0 0.0
        %1600 = vmatprep.subr.mxu0 0.0
        %1601 = vmatpush1.xpose.msra.mxu0 0.0
        %1602 = vmatprep.subr.mxu0 0.0
        %1603 = vmatpush1.xpose.msra.mxu0 0.0
        %1604 = vmatprep.subr.mxu0 0.0
        %1605 = vmatpush1.xpose.msra.mxu0 0.0
        %1606 = vmatprep.subr.mxu0 0.0
        %1607 = vmatpush1.xpose.msra.mxu0 0.0
        %1608 = vmatprep.subr.mxu0 0.0
        %1609 = vmatpush1.xpose.msra.mxu0 0.0
        %1610 = vmatprep.subr.mxu0 0.0
        %1611 = vmatpush1.xpose.msra.mxu0 0.0
        %1612 = vmatprep.subr.mxu0 0.0
        %1613 = vmatpush1.xpose.msra.mxu0 0.0
        %1614 = vmatprep.subr.mxu0 0.0
        %1615 = vmatpush1.xpose.msra.mxu0 0.0
        %1616 = vmatprep.mubr.f32.mxu0 0.0
        %1617 = vmatmul.mubr.f32.gmra.mrb[0].mxu0 %v1546
        %v1618 = vpop.f32.mrb[0].mxu0
        %v1619 = vadd.f32 0.0, %v1618
        %v1620 = vpop.f32.mrb[0].mxu0
        %1621 = vdwg.mxu0
        %v1622 = vmul.f32 %v1619, 0.35355338
        %v1623 = vsel %vm879, %v1622, -inf
        %1624 = vmax.xlane.f32.xlu0 %v1623
        %v1625 = vpop.xlane.xlu0 %1624
        %v1626 = vsub.f32 %v1622, %v1625
        %v1627 = vmul.f32 %v1626, 1.442695
        %v1628 = vpow.pop %v1627
        %v1629 = vsel %vm879, %v1628, 0.0
        %1630 = vadd.xlane.f32.xlu0 %v1629
        %v1631 = vpop.xlane.xlu0 %1630
        %v1632 = vrcp.pop %v1631
        %v1633 = vmul.f32 %v1628, %v1632
        %1634 = vrot.lane.b32.xlu0 %v785, 104
        %v1635 = vpop.permute.xlu0 %1634
        %1636 = vrot.lane.b32.xlu0 %v790, 104
        %v1637 = vpop.permute.xlu0 %1636
        %v1641 = vsel %vm879, %v1633, 0
        %1643 = vmatprep.subr.mxu0 0.0
        %1644 = vmatpush1.msra.mxu0 %v1635
        %1645 = vmatprep.subr.mxu0 0.0
        %1646 = vmatpush1.msra.mxu0 %v1637
        %1647 = vmatprep.subr.mxu0 0.0
        %1648 = vmatpush1.msra.mxu0 0.0
        %1649 = vmatprep.subr.mxu0 0.0
        %1650 = vmatpush1.msra.mxu0 0.0
        %1651 = vmatprep.subr.mxu0 0.0
        %1652 = vmatpush1.msra.mxu0 0.0
        %1653 = vmatprep.subr.mxu0 0.0
        %1654 = vmatpush1.msra.mxu0 0.0
        %1655 = vmatprep.subr.mxu0 0.0
        %1656 = vmatpush1.msra.mxu0 0.0
        %1657 = vmatprep.subr.mxu0 0.0
        %1658 = vmatpush1.msra.mxu0 0.0
        %1659 = vmatprep.subr.mxu0 0.0
        %1660 = vmatpush1.msra.mxu0 0.0
        %1661 = vmatprep.subr.mxu0 0.0
        %1662 = vmatpush1.msra.mxu0 0.0
        %1663 = vmatprep.subr.mxu0 0.0
        %1664 = vmatpush1.msra.mxu0 0.0
        %1665 = vmatprep.subr.mxu0 0.0
        %1666 = vmatpush1.msra.mxu0 0.0
        %1667 = vmatprep.subr.mxu0 0.0
        %1668 = vmatpush1.msra.mxu0 0.0
        %1669 = vmatprep.subr.mxu0 0.0
        %1670 = vmatpush1.msra.mxu0 0.0
        %1671 = vmatprep.subr.mxu0 0.0
        %1672 = vmatpush1.msra.mxu0 0.0
        %1673 = vmatprep.subr.mxu0 0.0
        %1674 = vmatpush1.msra.mxu0 0.0
        %1675 = vmatprep.subr.mxu0 0.0
        %1676 = vmatpush1.msra.mxu0 0.0
        %1677 = vmatprep.subr.mxu0 0.0
        %1678 = vmatpush1.msra.mxu0 0.0
        %1679 = vmatprep.subr.mxu0 0.0
        %1680 = vmatpush1.msra.mxu0 0.0
        %1681 = vmatprep.subr.mxu0 0.0
        %1682 = vmatpush1.msra.mxu0 0.0
        %1683 = vmatprep.subr.mxu0 0.0
        %1684 = vmatpush1.msra.mxu0 0.0
        %1685 = vmatprep.subr.mxu0 0.0
        %1686 = vmatpush1.msra.mxu0 0.0
        %1687 = vmatprep.subr.mxu0 0.0
        %1688 = vmatpush1.msra.mxu0 0.0
        %1689 = vmatprep.subr.mxu0 0.0
        %1690 = vmatpush1.msra.mxu0 0.0
        %1691 = vmatprep.subr.mxu0 0.0
        %1692 = vmatpush1.msra.mxu0 0.0
        %1693 = vmatprep.subr.mxu0 0.0
        %1694 = vmatpush1.msra.mxu0 0.0
        %1695 = vmatprep.subr.mxu0 0.0
        %1696 = vmatpush1.msra.mxu0 0.0
        %1697 = vmatprep.subr.mxu0 0.0
        %1698 = vmatpush1.msra.mxu0 0.0
        %1699 = vmatprep.subr.mxu0 0.0
        %1700 = vmatpush1.msra.mxu0 0.0
        %1701 = vmatprep.subr.mxu0 0.0
        %1702 = vmatpush1.msra.mxu0 0.0
        %1703 = vmatprep.subr.mxu0 0.0
        %1704 = vmatpush1.msra.mxu0 0.0
        %1705 = vmatprep.subr.mxu0 0.0
        %1706 = vmatpush1.msra.mxu0 0.0
        %1707 = vmatprep.mubr.f32.mxu0 0.0
        %1708 = vmatmul.mubr.f32.gmra.mrb[0].mxu0 %v1641
        %v1709 = vpop.f32.mrb[0].mxu0
        %v1710 = vadd.f32 0.0, %v1709
        %v1711 = vpop.f32.mrb[0].mxu0
        %1712 = vdwg.mxu0
        %v1714 = vsel %vm798, %v1710, 0
        %1716 = vmatprep.subr.mxu0 0.0
        %1717 = vmatpush1.msra.mxu0 %v796
        %1718 = vmatprep.subr.mxu0 0.0
        %1719 = vmatpush1.msra.mxu0 0.0
        %1720 = vmatprep.subr.mxu0 0.0
        %1721 = vmatpush1.msra.mxu0 0.0
        %1722 = vmatprep.subr.mxu0 0.0
        %1723 = vmatpush1.msra.mxu0 0.0
        %1724 = vmatprep.subr.mxu0 0.0
        %1725 = vmatpush1.msra.mxu0 0.0
        %1726 = vmatprep.subr.mxu0 0.0
        %1727 = vmatpush1.msra.mxu0 0.0
        %1728 = vmatprep.subr.mxu0 0.0
        %1729 = vmatpush1.msra.mxu0 0.0
        %1730 = vmatprep.subr.mxu0 0.0
        %1731 = vmatpush1.msra.mxu0 0.0
        %1732 = vmatprep.subr.mxu0 0.0
        %1733 = vmatpush1.msra.mxu0 0.0
        %1734 = vmatprep.subr.mxu0 0.0
        %1735 = vmatpush1.msra.mxu0 0.0
        %1736 = vmatprep.subr.mxu0 0.0
        %1737 = vmatpush1.msra.mxu0 0.0
        %1738 = vmatprep.subr.mxu0 0.0
        %1739 = vmatpush1.msra.mxu0 0.0
        %1740 = vmatprep.subr.mxu0 0.0
        %1741 = vmatpush1.msra.mxu0 0.0
        %1742 = vmatprep.subr.mxu0 0.0
        %1743 = vmatpush1.msra.mxu0 0.0
        %1744 = vmatprep.subr.mxu0 0.0
        %1745 = vmatpush1.msra.mxu0 0.0
        %1746 = vmatprep.subr.mxu0 0.0
        %1747 = vmatpush1.msra.mxu0 0.0
        %1748 = vmatprep.subr.mxu0 0.0
        %1749 = vmatpush1.msra.mxu0 0.0
        %1750 = vmatprep.subr.mxu0 0.0
        %1751 = vmatpush1.msra.mxu0 0.0
        %1752 = vmatprep.subr.mxu0 0.0
        %1753 = vmatpush1.msra.mxu0 0.0
        %1754 = vmatprep.subr.mxu0 0.0
        %1755 = vmatpush1.msra.mxu0 0.0
        %1756 = vmatprep.subr.mxu0 0.0
        %1757 = vmatpush1.msra.mxu0 0.0
        %1758 = vmatprep.subr.mxu0 0.0
        %1759 = vmatpush1.msra.mxu0 0.0
        %1760 = vmatprep.subr.mxu0 0.0
        %1761 = vmatpush1.msra.mxu0 0.0
        %1762 = vmatprep.subr.mxu0 0.0
        %1763 = vmatpush1.msra.mxu0 0.0
        %1764 = vmatprep.subr.mxu0 0.0
        %1765 = vmatpush1.msra.mxu0 0.0
        %1766 = vmatprep.subr.mxu0 0.0
        %1767 = vmatpush1.msra.mxu0 0.0
        %1768 = vmatprep.subr.mxu0 0.0
        %1769 = vmatpush1.msra.mxu0 0.0
        %1770 = vmatprep.subr.mxu0 0.0
        %1771 = vmatpush1.msra.mxu0 0.0
        %1772 = vmatprep.subr.mxu0 0.0
        %1773 = vmatpush1.msra.mxu0 0.0
        %1774 = vmatprep.subr.mxu0 0.0
        %1775 = vmatpush1.msra.mxu0 0.0
        %1776 = vmatprep.subr.mxu0 0.0
        %1777 = vmatpush1.msra.mxu0 0.0
        %1778 = vmatprep.subr.mxu0 0.0
        %1779 = vmatpush1.msra.mxu0 0.0
        %1780 = vmatprep.mubr.f32.mxu0 0.0
        %1781 = vmatmul.mubr.f32.gmra.mrb[0].mxu0 %v1714
        %v1782 = vpop.f32.mrb[0].mxu0
        %v1783 = vadd.f32 0.0, %v1782
        %v1784 = vpop.f32.mrb[0].mxu0
        %1785 = vdwg.mxu0
        %v1786 = vadd.f32 %v1539, %v1783
        %v1787 = vadd.f32 %v527, %v1786
        %v1788 = vsel %vm541, %v1787, 0.0
        %1789 = vadd.xlane.f32.xlu0 %v1788
        %v1790 = vpop.xlane.xlu0 %1789
        %v1791 = vrcp.pop 32.0
        %v1792 = vmul.f32 %v1790, %v1791
        %v1793 = vsub.f32 %v1787, %v1792
        %v1794 = vmul.f32 %v1793, %v1793
        %v1795 = vsel %vm541, %v1794, 0.0
        %1796 = vadd.xlane.f32.xlu0 %v1795
        %v1797 = vpop.xlane.xlu0 %1796
        %v1798 = vmul.f32 %v1797, %v1791
        %v1799 = vadd.f32 %v1798, 1e-05
        %v1800 = vrsqrt.pop %v1799
        %v1801 = vmul.f32 %v1793, %v1800
        %v1802 = vld [vmem:[%s10] sm:$0x1]
        %v1804 = vlaneseq
        %v1805 = vshrl.u32 %v1804, 7
        %v1806 = vsub.s32 0, %v1805
        %v1807 = vrot.slane %v1802, %v1806
        %v1809 = vmul.f32 %v1801, %v1807
        %v1810 = vld [vmem:[%s11] sm:$0x1]
        %v1812 = vlaneseq
        %v1813 = vshrl.u32 %v1812, 7
        %v1814 = vsub.s32 0, %v1813
        %v1815 = vrot.slane %v1810, %v1814
        %v1817 = vadd.f32 %v1809, %v1815
        %1818 = vst.msk [vmem:[%s526] sm:$0xff] %vm541, %v1817
        %s1819 = sand.u32 %s304, 1
        %s1820 = scalar_lea.sflag [#allocation4], %s1819
        %s1821 = sand.u32 %s304, 1
        %s1822 = smul.addr %s1821, 8
        %s1823 = scalar_lea.vmem [#allocation13], %s1822
        // Predicated region
        $region93: #{tpu_custom_call.1} parent=67 // pred_check
          %p1824 = pneg %p314
        $region94: #{tpu_custom_call.1} parent=67 // pred_check_branch
          %1826 = sbr.rel (%p1824) target = $region96
        $region95: #{tpu_custom_call.1} parent=67 // pred_region
          %s1828 = ssub.s32 128, 128
          %1829 = vsyncadd %s1820, %s1828
          %s1830 = smul.addr %s34, 128
          %s1831 = scalar_lea.hbm %s12, %s1830
          %s1833 = sshll.u32 %s1823, 4
          %s1834 = int_to_ptr.vmem [resolvable:$true] %s1833
          %1836 = dma.vmem_to_hbm [thread:$0]  %s1834, 128, %s1831, %s1820
        $region96: #{tpu_custom_call.1} parent=67 // pred_fallthru
          _
      $region68: #{tpu_custom_call.1} parent=5 // pred_fallthru
        _
      %p1837 = scmp.le.s32.totalorder 2, %s29
      // Predicated region
      $region97: #{tpu_custom_call.1} parent=5 // pred_check
        %p1838 = pneg %p1837
      $region98: #{tpu_custom_call.1} parent=5 // pred_check_branch
        %1840 = sbr.rel (%p1838) target = $region100
      $region99: #{tpu_custom_call.1} parent=5 // pred_region
        %s1841 = ssub.s32 %s29, 2
        // Predicated region
        $region101: #{tpu_custom_call.1} parent=99 // pred_check
          %p1842 = pneg %p320
        $region102: #{tpu_custom_call.1} parent=99 // pred_check_branch
          %1844 = sbr.rel (%p1842) target = $region104
        $region103: #{tpu_custom_call.1} parent=99 // pred_region
          %s1845 = sand.u32 %s305, 1
          %s1846 = scalar_lea.sflag [#allocation4], %s1845
          %s1847 = sand.u32 %s305, 1
          %s1848 = smul.addr %s1847, 8
          %s1849 = scalar_lea.vmem [#allocation13], %s1848
          %1850 = dma.done %s1846, 128
        $region104: #{tpu_custom_call.1} parent=99 // pred_fallthru
          _
      $region100: #{tpu_custom_call.1} parent=5 // pred_fallthru
        _
    $region6: #{tpu_custom_call.1} parent=1 // loop_footer
      %s33 = sadd.s32 1, %s29
    $region7: #{tpu_custom_call.1} parent=1 // loop_footer_branch
      %28 = sbr.rel target = $region3
    $region8: #{tpu_custom_call.1} parent=1 // loop_exit
      _
    %1851 = vsyncpa [#allocation3], 1
    %s1852 = scalar_lea.sflag [#allocation3], 1
    %1853 = vsyncpa %s1852, 1
    %1854 = vsyncpa [#allocation6], 1
    %s1855 = scalar_lea.sflag [#allocation6], 1
    %1856 = vsyncpa %s1855, 1
    %1857 = vsyncpa [#allocation9], 1
    %1858 = vsyncpa [#allocation12], 1
    %1859 = vsyncpa [#allocation4], 1
    %s1860 = scalar_lea.sflag [#allocation4], 1
    %1861 = vsyncpa %s1860, 1

</llo_original>
